<compile_context>
chip_gen: v5e
topology: v5e:2x2
jax: 0.10.0
libtpu: 0.0.40
codegen_flags: <defaults>
</compile_context>

<pallas_src>
import jax
import jax.numpy as jnp
from jax.experimental import pallas as pl
from jax.experimental.pallas import tpu as pltpu


_TEMPERATURE = 0.2
_EPS = 1e-8
_VMEM = pl.BlockSpec(memory_space=pltpu.MemorySpace.VMEM)


# ----------------------------------------------------------------------------
# helpers
# ----------------------------------------------------------------------------

def _round_up(v, m):
    return ((v + m - 1) // m) * m


def _pad2(a, rows, cols):
    return jnp.pad(a, ((0, rows - a.shape[0]), (0, cols - a.shape[1])))


def _vmem_limit_and_row_tile():
    """Generation-aware VMEM cap + row-tile size."""
    cap = 128 * 1024 * 1024
    try:
        cap = int(pltpu.get_tpu_info().vmem_capacity_bytes)
    except Exception:
        pass
    if cap <= 64 * 1024 * 1024:          # v7x-class: leave headroom for scratch
        return 52 * 1024 * 1024, 256
    return 100 * 1024 * 1024, 512        # v5e / v6e (128 MiB physical)


# ----------------------------------------------------------------------------
# Pallas kernels
# ----------------------------------------------------------------------------

def _encode_kernel(a_ref, y0c_ref, y0r_ref, ssl_ref, s_ref,
                   w1_ref, b1_ref, w2_ref, b2_ref, u1_ref, acc_ref):
    """GCN encoder + graph_pred_linear.  Emits u1 = dis * node_emb (bf16)."""
    k = pl.program_id(1)

    @pl.when(k == 0)
    def _():
        acc_ref[...] = jnp.zeros_like(acc_ref)

    # Accumulate A @ (dis_sl * x) over column tiles (reduction axis is last).
    acc_ref[...] += jnp.dot(a_ref[...], y0c_ref[...],
                            preferred_element_type=jnp.float32)

    @pl.when(k == pl.num_programs(1) - 1)
    def _():
        # A_sl @ x == dis_sl * (A @ (dis_sl*x) + dis_sl*x)   (self-loop folded)
        ax = ssl_ref[...] * (acc_ref[...] + y0r_ref[...].astype(jnp.float32))
        # If h_pad < d_pad one would pre-apply W1 to x instead; with
        # input_dim <= hidden this order contracts the smaller padded dim.
        h = jnp.dot(ax.astype(jnp.bfloat16), w1_ref[...],
                    preferred_element_type=jnp.float32) + b1_ref[...]
        h = jnp.maximum(h, 0.0)
        ne = jnp.dot(h.astype(jnp.bfloat16), w2_ref[...],
                     preferred_element_type=jnp.float32) + b2_ref[...]
        # dis * node_emb: directly the column-scaled operand of MP hop 1.
        u1_ref[...] = (s_ref[...] * ne).astype(u1_ref.dtype)


def _mp_hop_kernel(a_ref, vin_ref, rs_ref, vout_ref, acc_ref):
    """One normalized message-passing hop: out = rs * (A @ vin)."""
    k = pl.program_id(1)

    @pl.when(k == 0)
    def _():
        acc_ref[...] = jnp.zeros_like(acc_ref)

    acc_ref[...] += jnp.dot(a_ref[...], vin_ref[...],
                            preferred_element_type=jnp.float32)

    @pl.when(k == pl.num_programs(1) - 1)
    def _():
        vout_ref[...] = (rs_ref[...] * acc_ref[...]).astype(vout_ref.dtype)


def _gather_loss_kernel(idx_ref, wmask_ref, emb_ref, loss_ref):
    """Fused triplet gather (single bf16 one-hot matmul) + gprompt_link_loss."""
    m3 = idx_ref.shape[0]
    mp = m3 // 3
    n_pad = emb_ref.shape[0]

    # TODO(synk): for large M the (3M x N) one-hot is O(M*N) VMEM; switch to
    # dynamic row gathers (pl.ds / jnp.take) from a VMEM-resident all_emb.
    col = jax.lax.broadcasted_iota(jnp.int32, (m3, n_pad), 1)
    oh = (idx_ref[...] == col).astype(jnp.bfloat16)
    g = jnp.dot(oh, emb_ref[...], preferred_element_type=jnp.float32)

    anchor, pos, neg = g[:mp], g[mp:2 * mp], g[2 * mp:]
    nn = jnp.sum(anchor * anchor, axis=-1, keepdims=True)
    pp = jnp.sum(pos * pos, axis=-1, keepdims=True)
    qq = jnp.sum(neg * neg, axis=-1, keepdims=True)
    dp = jnp.sum(anchor * pos, axis=-1, keepdims=True)
    dq = jnp.sum(anchor * neg, axis=-1, keepdims=True)

    # torch.cosine_similarity convention: dot / max(|a|*|b|, eps)
    na = jnp.sqrt(nn)
    cos_p = dp / jnp.maximum(na * jnp.sqrt(pp), _EPS)
    cos_q = dq / jnp.maximum(na * jnp.sqrt(qq), _EPS)

    # -log(exp(cp/t)/(exp(cp/t)+exp(cq/t))) == softplus((cq-cp)/t), stable form
    z = (cos_q - cos_p) * (1.0 / _TEMPERATURE)
    per_row = jnp.maximum(z, 0.0) + jnp.log(1.0 + jnp.exp(-jnp.abs(z)))
    # wmask carries 1/M for valid rows, 0 for padded rows -> masked mean
    loss_ref[...] = jnp.sum(per_row * wmask_ref[...], axis=0, keepdims=True)


# ----------------------------------------------------------------------------
# XLA-side glue: padded raw adjacency + scale vectors
# ----------------------------------------------------------------------------

def build_adjacency_padded(edge_index, num_nodes, n_pad):
    """Raw 0/1 undirected adjacency (no self loops) at padded size in bf16,
    plus the two symmetric-normalization scale vectors (f32, (n_pad,1))."""
    src, dst = edge_index[0], edge_index[1]
    a = jnp.zeros((n_pad, n_pad), jnp.bfloat16)
    a = a.at[dst, src].set(1.0)
    a = a.at[src, dst].set(1.0)                      # to_undirected (coalesced)
    diag = jnp.arange(num_nodes)
    a = a.at[diag, diag].set(0.0)                    # remove_self_loops, O(N)

    deg = jnp.sum(a, axis=1, dtype=jnp.float32)      # symmetric degree
    valid = (jnp.arange(n_pad) < num_nodes).astype(jnp.float32)
    dis = jnp.where(deg > 0, jax.lax.rsqrt(jnp.maximum(deg, 1e-12)), 0.0)
    deg_sl = deg + valid                             # +1 self loop, real rows only
    dis_sl = jnp.where(deg_sl > 0, jax.lax.rsqrt(jnp.maximum(deg_sl, 1e-12)), 0.0)
    return a, dis.reshape(n_pad, 1), dis_sl.reshape(n_pad, 1)


# ----------------------------------------------------------------------------
# Forward
# ----------------------------------------------------------------------------

def edgepred_gprompt_forward(params, x, edge_index, batch):
    n_nodes, d_in = x.shape
    hidden = params["w1"].shape[1]
    out_dim = params["w2"].shape[1]
    m = batch.shape[0]

    vmem_limit, tile_pref = _vmem_limit_and_row_tile()
    n_pad = _round_up(n_nodes, 128)
    tm = min(tile_pref, n_pad)
    n_pad = _round_up(n_pad, tm)
    tk = tm
    d_pad = _round_up(d_in, 128)
    h_pad = _round_up(hidden, 128)
    o_pad = _round_up(out_dim, 128)
    m_pad = _round_up(m, 8)

    a, dis, dis_sl = build_adjacency_padded(edge_index, n_nodes, n_pad)

    w1_p = _pad2(params["w1"], d_pad, h_pad).astype(jnp.bfloat16)
    b1_p = _pad2(params["b1"], 1, h_pad).astype(jnp.float32)
    w2_p = _pad2(params["w2"], h_pad, o_pad).astype(jnp.bfloat16)
    b2_p = _pad2(params["b2"], 1, o_pad).astype(jnp.float32)

    x_p = _pad2(x, n_pad, d_pad)
    y0 = (dis_sl * x_p).astype(jnp.bfloat16)          # dis_sl * x, O(N*d) only
    dis2 = dis * dis                                  # hop-1 row scale

    grid = (n_pad // tm, n_pad // tk)
    cparams = pltpu.CompilerParams(
        dimension_semantics=("parallel", "arbitrary"),
        vmem_limit_bytes=vmem_limit)

    # ---- stage 1: GCN encoder + graph_pred_linear -> u1 = dis * node_emb ----
    enc_cost = pl.CostEstimate(
        flops=int(2 * n_pad * n_pad * d_pad + 2 * n_pad * d_pad * h_pad
                  + 2 * n_pad * h_pad * o_pad),
        transcendentals=0,
        bytes_accessed=int(2 * n_pad * n_pad + 4 * n_pad * d_pad
                           + 2 * (d_pad * h_pad + h_pad * o_pad)
                           + 2 * n_pad * o_pad))
    u1 = pl.pallas_call(
        _encode_kernel,
        out_shape=jax.ShapeDtypeStruct((n_pad, o_pad), jnp.bfloat16),
        grid_spec=pltpu.PrefetchScalarGridSpec(
            num_scalar_prefetch=0, grid=grid,
            in_specs=[
                pl.BlockSpec((tm, tk), lambda i, k: (i, k)),      # A tile
                pl.BlockSpec((tk, d_pad), lambda i, k: (k, 0)),   # y0 col tile
                pl.BlockSpec((tm, d_pad), lambda i, k: (i, 0)),   # y0 row tile
                pl.BlockSpec((tm, 1), lambda i, k: (i, 0)),       # dis_sl rows
                pl.BlockSpec((tm, 1), lambda i, k: (i, 0)),       # dis rows
                pl.BlockSpec((d_pad, h_pad), lambda i, k: (0, 0)),
                pl.BlockSpec((1, h_pad), lambda i, k: (0, 0)),
                pl.BlockSpec((h_pad, o_pad), lambda i, k: (0, 0)),
                pl.BlockSpec((1, o_pad), lambda i, k: (0, 0)),
            ],
            out_specs=pl.BlockSpec((tm, o_pad), lambda i, k: (i, 0)),
            scratch_shapes=[pltpu.VMEM((tm, d_pad), jnp.float32)]),
        compiler_params=cparams,
        cost_estimate=enc_cost,
    )(a, y0, y0, dis_sl, dis, w1_p, b1_p, w2_p, b2_p)

    # ---- stages 2-3: two MP hops, A_mp @ v == dis * (A @ (dis * v)) ----
    hop_cost = pl.CostEstimate(
        flops=int(2 * n_pad * n_pad * o_pad), transcendentals=0,
        bytes_accessed=int(2 * n_pad * n_pad + 4 * n_pad * o_pad))

    def mp_hop(vin, row_scale):
        return pl.pallas_call(
            _mp_hop_kernel,
            out_shape=jax.ShapeDtypeStruct((n_pad, o_pad), jnp.bfloat16),
            grid_spec=pltpu.PrefetchScalarGridSpec(
                num_scalar_prefetch=0, grid=grid,
                in_specs=[
                    pl.BlockSpec((tm, tk), lambda i, k: (i, k)),
                    pl.BlockSpec((tk, o_pad), lambda i, k: (k, 0)),
                    pl.BlockSpec((tm, 1), lambda i, k: (i, 0)),
                ],
                out_specs=pl.BlockSpec((tm, o_pad), lambda i, k: (i, 0)),
                scratch_shapes=[pltpu.VMEM((tm, o_pad), jnp.float32)]),
            compiler_params=cparams,
            cost_estimate=hop_cost,
        )(a, vin, row_scale)

    # u1 = dis*node_emb ; u2 = dis*hop1 = dis^2*(A@u1) ; all_emb = dis*(A@u2)
    u2 = mp_hop(u1, dis2)
    all_emb = mp_hop(u2, dis)

    # ---- stage 4: fused triplet gather + gprompt_link_loss ----
    def pad_idx(col):
        col = jnp.pad(col.astype(jnp.int32), (0, m_pad - m))
        return col.reshape(m_pad, 1)

    idx = jnp.concatenate(
        [pad_idx(batch[:, 0]), pad_idx(batch[:, 1]), pad_idx(batch[:, 2])], axis=0)
    wmask = ((jnp.arange(m_pad) < m).astype(jnp.float32) / float(m)
             ).reshape(m_pad, 1)

    loss = pl.pallas_call(
        _gather_loss_kernel,
        out_shape=jax.ShapeDtypeStruct((1, 1), jnp.float32),
        in_specs=[_VMEM, _VMEM, _VMEM],
        out_specs=_VMEM,
        compiler_params=pltpu.CompilerParams(vmem_limit_bytes=vmem_limit),
        cost_estimate=pl.CostEstimate(
            flops=int(6 * m_pad * n_pad * o_pad + 16 * m_pad * o_pad),
            transcendentals=int(8 * m_pad),
            bytes_accessed=int(2 * n_pad * o_pad + 16 * m_pad + 4)),
    )(idx, wmask, all_emb)
    # TODO(synk): for very large N, tile this gather stage too (all_emb in HBM,
    # DMA only the needed row tiles) instead of a full-VMEM all_emb block.
    return loss[0, 0]


# ----------------------------------------------------------------------------
# Main
# ----------------------------------------------------------------------------

if __name__ == "__main__":
    num_nodes = 32
    input_dim = 16
    hidden_dim = 32
    output_dim = 32
    num_edges = 64
    num_triplets = 8

    key = jax.random.PRNGKey(0)
    k_x, k_e, k_b, k_w1, k_b1, k_w2, k_b2 = jax.random.split(key, 7)

    x = jax.random.normal(k_x, (num_nodes, input_dim), dtype=jnp.float32)
    edge_index = jax.random.randint(k_e, (2, num_edges), 0, num_nodes, dtype=jnp.int32)
    batch = jax.random.randint(k_b, (num_triplets, 3), 0, num_nodes, dtype=jnp.int32)

    params = {
        "w1": 0.1 * jax.random.normal(k_w1, (input_dim, hidden_dim), dtype=jnp.float32),
        "b1": 0.1 * jax.random.normal(k_b1, (1, hidden_dim), dtype=jnp.float32),
        "w2": 0.1 * jax.random.normal(k_w2, (hidden_dim, output_dim), dtype=jnp.float32),
        "b2": 0.1 * jax.random.normal(k_b2, (1, output_dim), dtype=jnp.float32),
    }

    fwd = jax.jit(edgepred_gprompt_forward)
    loss = jax.block_until_ready(fwd(params, x, edge_index, batch))
    assert jnp.isfinite(loss), "loss is not finite"
    print("KERNEL_OK")
</pallas_src>

<mosaic_0001>
module attributes {stable_mosaic.version = 11 : i64} {
  func.func @_encode_kernel(%arg0: i32, %arg1: i32, %arg2: memref<128x128xbf16, #tpu.memory_space<vmem>>, %arg3: memref<128x128xbf16, #tpu.memory_space<vmem>>, %arg4: memref<128x128xbf16, #tpu.memory_space<vmem>>, %arg5: memref<128x1xf32, #tpu.memory_space<vmem>>, %arg6: memref<128x1xf32, #tpu.memory_space<vmem>>, %arg7: memref<128x128xbf16, #tpu.memory_space<vmem>>, %arg8: memref<1x128xf32, #tpu.memory_space<vmem>>, %arg9: memref<128x128xbf16, #tpu.memory_space<vmem>>, %arg10: memref<1x128xf32, #tpu.memory_space<vmem>>, %arg11: memref<128x128xbf16, #tpu.memory_space<vmem>>, %arg12: memref<128x128xf32, #tpu.memory_space<vmem>>) attributes {dimension_semantics = [#tpu.dimension_semantics<parallel>, #tpu.dimension_semantics<arbitrary>], iteration_bounds = array<i64: 1, 1>, scalar_prefetch = 0 : i64, scratch_operands = 1 : i64, tpu.core_type = #tpu.core_type<tc>, window_params = [{transform_indices = @transform_0, window_bounds = array<i64: 128, 128>}, {transform_indices = @transform_1, window_bounds = array<i64: 128, 128>}, {transform_indices = @transform_2, window_bounds = array<i64: 128, 128>}, {transform_indices = @transform_3, window_bounds = array<i64: 128, 1>}, {transform_indices = @transform_4, window_bounds = array<i64: 128, 1>}, {pipeline_mode = #tpu.pipeline_mode<synchronous>, transform_indices = @transform_5, window_bounds = array<i64: 128, 128>}, {pipeline_mode = #tpu.pipeline_mode<synchronous>, transform_indices = @transform_6, window_bounds = array<i64: 1, 128>}, {pipeline_mode = #tpu.pipeline_mode<synchronous>, transform_indices = @transform_7, window_bounds = array<i64: 128, 128>}, {pipeline_mode = #tpu.pipeline_mode<synchronous>, transform_indices = @transform_8, window_bounds = array<i64: 1, 128>}, {transform_indices = @transform_9, window_bounds = array<i64: 128, 128>}]} {
    %c0_i32 = arith.constant 0 : i32
    %0 = arith.cmpi eq, %arg1, %c0_i32 : i32
    %1 = arith.extui %0 : i1 to i32
    %c0_i32_0 = arith.constant 0 : i32
    %2 = arith.cmpi ne, %1, %c0_i32_0 : i32
    scf.if %2 {
      %cst_10 = arith.constant 0.000000e+00 : f32
      %12 = vector.broadcast %cst_10 : f32 to vector<128x128xf32>
      %c0_11 = arith.constant 0 : index
      %c0_12 = arith.constant 0 : index
      %13 = vector.load %arg12[%c0_11, %c0_12] : memref<128x128xf32, #tpu.memory_space<vmem>>, vector<128x128xf32>
      tpu.vector_store %arg12[%c0_11, %c0_12], %12 {strides = array<i32>} : memref<128x128xf32, #tpu.memory_space<vmem>>, vector<128x128xf32>,
    } else {
    }
    %c0 = arith.constant 0 : index
    %c0_1 = arith.constant 0 : index
    %3 = vector.load %arg12[%c0, %c0_1] : memref<128x128xf32, #tpu.memory_space<vmem>>, vector<128x128xf32>
    %c0_2 = arith.constant 0 : index
    %c0_3 = arith.constant 0 : index
    %4 = vector.load %arg2[%c0_2, %c0_3] : memref<128x128xbf16, #tpu.memory_space<vmem>>, vector<128x128xbf16>
    %c0_4 = arith.constant 0 : index
    %c0_5 = arith.constant 0 : index
    %5 = vector.load %arg3[%c0_4, %c0_5] : memref<128x128xbf16, #tpu.memory_space<vmem>>, vector<128x128xbf16>
    %cst = arith.constant dense<0.000000e+00> : vector<128x128xf32>
    %6 = tpu.matmul %4, %5, %cst {dimension_numbers = #tpu.dot_dimension_numbers<[1], [0], [0], [1], [0, 0, 1, 1], [], []>} : vector<128x128xbf16>, vector<128x128xbf16>, vector<128x128xf32> -> vector<128x128xf32>
    %7 = arith.addf %3, %6 : vector<128x128xf32>
    %c0_6 = arith.constant 0 : index
    %c0_7 = arith.constant 0 : index
    %8 = vector.load %arg12[%c0_6, %c0_7] : memref<128x128xf32, #tpu.memory_space<vmem>>, vector<128x128xf32>
    tpu.vector_store %arg12[%c0_6, %c0_7], %7 {strides = array<i32>} : memref<128x128xf32, #tpu.memory_space<vmem>>, vector<128x128xf32>,
    %c0_i32_8 = arith.constant 0 : i32
    %9 = arith.cmpi eq, %arg1, %c0_i32_8 : i32
    %10 = arith.extui %9 : i1 to i32
    %c0_i32_9 = arith.constant 0 : i32
    %11 = arith.cmpi ne, %10, %c0_i32_9 : i32
    scf.if %11 {
      %c0_10 = arith.constant 0 : index
      %c0_11 = arith.constant 0 : index
      %12 = vector.load %arg5[%c0_10, %c0_11] : memref<128x1xf32, #tpu.memory_space<vmem>>, vector<128x1xf32>
      %c0_12 = arith.constant 0 : index
      %c0_13 = arith.constant 0 : index
      %13 = vector.load %arg12[%c0_12, %c0_13] : memref<128x128xf32, #tpu.memory_space<vmem>>, vector<128x128xf32>
      %c0_14 = arith.constant 0 : index
      %c0_15 = arith.constant 0 : index
      %14 = vector.load %arg4[%c0_14, %c0_15] : memref<128x128xbf16, #tpu.memory_space<vmem>>, vector<128x128xbf16>
      %15 = arith.extf %14 : vector<128x128xbf16> to vector<128x128xf32>
      %16 = arith.addf %13, %15 : vector<128x128xf32>
      %17 = vector.broadcast %12 : vector<128x1xf32> to vector<128x128xf32>
      %18 = arith.mulf %17, %16 : vector<128x128xf32>
      %19 = arith.truncf %18 : vector<128x128xf32> to vector<128x128xbf16>
      %c0_16 = arith.constant 0 : index
      %c0_17 = arith.constant 0 : index
      %20 = vector.load %arg7[%c0_16, %c0_17] : memref<128x128xbf16, #tpu.memory_space<vmem>>, vector<128x128xbf16>
      %cst_18 = arith.constant dense<0.000000e+00> : vector<128x128xf32>
      %21 = tpu.matmul %19, %20, %cst_18 {dimension_numbers = #tpu.dot_dimension_numbers<[1], [0], [0], [1], [0, 0, 1, 1], [], []>} : vector<128x128xbf16>, vector<128x128xbf16>, vector<128x128xf32> -> vector<128x128xf32>
      %c0_19 = arith.constant 0 : index
      %c0_20 = arith.constant 0 : index
      %22 = vector.load %arg8[%c0_19, %c0_20] : memref<1x128xf32, #tpu.memory_space<vmem>>, vector<1x128xf32>
      %23 = vector.broadcast %22 : vector<1x128xf32> to vector<128x128xf32>
      %24 = arith.addf %21, %23 : vector<128x128xf32>
      %cst_21 = arith.constant 0.000000e+00 : f32
      %25 = vector.broadcast %cst_21 : f32 to vector<128x128xf32>
      %26 = arith.maximumf %24, %25 : vector<128x128xf32>
      %27 = arith.truncf %26 : vector<128x128xf32> to vector<128x128xbf16>
      %c0_22 = arith.constant 0 : index
      %c0_23 = arith.constant 0 : index
      %28 = vector.load %arg9[%c0_22, %c0_23] : memref<128x128xbf16, #tpu.memory_space<vmem>>, vector<128x128xbf16>
      %cst_24 = arith.constant dense<0.000000e+00> : vector<128x128xf32>
      %29 = tpu.matmul %27, %28, %cst_24 {dimension_numbers = #tpu.dot_dimension_numbers<[1], [0], [0], [1], [0, 0, 1, 1], [], []>} : vector<128x128xbf16>, vector<128x128xbf16>, vector<128x128xf32> -> vector<128x128xf32>
      %c0_25 = arith.constant 0 : index
      %c0_26 = arith.constant 0 : index
      %30 = vector.load %arg10[%c0_25, %c0_26] : memref<1x128xf32, #tpu.memory_space<vmem>>, vector<1x128xf32>
      %31 = vector.broadcast %30 : vector<1x128xf32> to vector<128x128xf32>
      %32 = arith.addf %29, %31 : vector<128x128xf32>
      %c0_27 = arith.constant 0 : index
      %c0_28 = arith.constant 0 : index
      %33 = vector.load %arg6[%c0_27, %c0_28] : memref<128x1xf32, #tpu.memory_space<vmem>>, vector<128x1xf32>
      %34 = vector.broadcast %33 : vector<128x1xf32> to vector<128x128xf32>
      %35 = arith.mulf %34, %32 : vector<128x128xf32>
      %36 = arith.truncf %35 : vector<128x128xf32> to vector<128x128xbf16>
      %c0_29 = arith.constant 0 : index
      %c0_30 = arith.constant 0 : index
      %37 = vector.load %arg11[%c0_29, %c0_30] : memref<128x128xbf16, #tpu.memory_space<vmem>>, vector<128x128xbf16>
      tpu.vector_store %arg11[%c0_29, %c0_30], %36 {strides = array<i32>} : memref<128x128xbf16, #tpu.memory_space<vmem>>, vector<128x128xbf16>,
    } else {
    }
    return
  }
  func.func @transform_0(%arg0: i32, %arg1: i32) -> (i32, i32) {
    %c0_i32 = arith.constant 0 : i32
    return %arg0, %arg1 : i32, i32
  }
  func.func @transform_1(%arg0: i32, %arg1: i32) -> (i32, i32) {
    %c0_i32 = arith.constant 0 : i32
    %c0_i32_0 = arith.constant 0 : i32
    return %arg1, %c0_i32 : i32, i32
  }
  func.func @transform_2(%arg0: i32, %arg1: i32) -> (i32, i32) {
    %c0_i32 = arith.constant 0 : i32
    %c0_i32_0 = arith.constant 0 : i32
    return %arg0, %c0_i32 : i32, i32
  }
  func.func @transform_3(%arg0: i32, %arg1: i32) -> (i32, i32) {
    %c0_i32 = arith.constant 0 : i32
    %c0_i32_0 = arith.constant 0 : i32
    return %arg0, %c0_i32 : i32, i32
  }
  func.func @transform_4(%arg0: i32, %arg1: i32) -> (i32, i32) {
    %c0_i32 = arith.constant 0 : i32
    %c0_i32_0 = arith.constant 0 : i32
    return %arg0, %c0_i32 : i32, i32
  }
  func.func @transform_5(%arg0: i32, %arg1: i32) -> (i32, i32) {
    %c0_i32 = arith.constant 0 : i32
    %c0_i32_0 = arith.constant 0 : i32
    %c0_i32_1 = arith.constant 0 : i32
    return %c0_i32, %c0_i32_0 : i32, i32
  }
  func.func @transform_6(%arg0: i32, %arg1: i32) -> (i32, i32) {
    %c0_i32 = arith.constant 0 : i32
    %c0_i32_0 = arith.constant 0 : i32
    %c0_i32_1 = arith.constant 0 : i32
    return %c0_i32, %c0_i32_0 : i32, i32
  }
  func.func @transform_7(%arg0: i32, %arg1: i32) -> (i32, i32) {
    %c0_i32 = arith.constant 0 : i32
    %c0_i32_0 = arith.constant 0 : i32
    %c0_i32_1 = arith.constant 0 : i32
    return %c0_i32, %c0_i32_0 : i32, i32
  }
  func.func @transform_8(%arg0: i32, %arg1: i32) -> (i32, i32) {
    %c0_i32 = arith.constant 0 : i32
    %c0_i32_0 = arith.constant 0 : i32
    %c0_i32_1 = arith.constant 0 : i32
    return %c0_i32, %c0_i32_0 : i32, i32
  }
  func.func @transform_9(%arg0: i32, %arg1: i32) -> (i32, i32) {
    %c0_i32 = arith.constant 0 : i32
    %c0_i32_0 = arith.constant 0 : i32
    return %arg0, %c0_i32 : i32, i32
  }
}

module attributes {stable_mosaic.version = 11 : i64} {
  func.func @_mp_hop_kernel(%arg0: i32, %arg1: i32, %arg2: memref<128x128xbf16, #tpu.memory_space<vmem>>, %arg3: memref<128x128xbf16, #tpu.memory_space<vmem>>, %arg4: memref<128x1xf32, #tpu.memory_space<vmem>>, %arg5: memref<128x128xbf16, #tpu.memory_space<vmem>>, %arg6: memref<128x128xf32, #tpu.memory_space<vmem>>) attributes {dimension_semantics = [#tpu.dimension_semantics<parallel>, #tpu.dimension_semantics<arbitrary>], iteration_bounds = array<i64: 1, 1>, scalar_prefetch = 0 : i64, scratch_operands = 1 : i64, tpu.core_type = #tpu.core_type<tc>, window_params = [{transform_indices = @transform_0, window_bounds = array<i64: 128, 128>}, {transform_indices = @transform_1, window_bounds = array<i64: 128, 128>}, {transform_indices = @transform_2, window_bounds = array<i64: 128, 1>}, {transform_indices = @transform_3, window_bounds = array<i64: 128, 128>}]} {
    %c0_i32 = arith.constant 0 : i32
    %0 = arith.cmpi eq, %arg1, %c0_i32 : i32
    %1 = arith.extui %0 : i1 to i32
    %c0_i32_0 = arith.constant 0 : i32
    %2 = arith.cmpi ne, %1, %c0_i32_0 : i32
    scf.if %2 {
      %cst_10 = arith.constant 0.000000e+00 : f32
      %12 = vector.broadcast %cst_10 : f32 to vector<128x128xf32>
      %c0_11 = arith.constant 0 : index
      %c0_12 = arith.constant 0 : index
      %13 = vector.load %arg6[%c0_11, %c0_12] : memref<128x128xf32, #tpu.memory_space<vmem>>, vector<128x128xf32>
      tpu.vector_store %arg6[%c0_11, %c0_12], %12 {strides = array<i32>} : memref<128x128xf32, #tpu.memory_space<vmem>>, vector<128x128xf32>,
    } else {
    }
    %c0 = arith.constant 0 : index
    %c0_1 = arith.constant 0 : index
    %3 = vector.load %arg6[%c0, %c0_1] : memref<128x128xf32, #tpu.memory_space<vmem>>, vector<128x128xf32>
    %c0_2 = arith.constant 0 : index
    %c0_3 = arith.constant 0 : index
    %4 = vector.load %arg2[%c0_2, %c0_3] : memref<128x128xbf16, #tpu.memory_space<vmem>>, vector<128x128xbf16>
    %c0_4 = arith.constant 0 : index
    %c0_5 = arith.constant 0 : index
    %5 = vector.load %arg3[%c0_4, %c0_5] : memref<128x128xbf16, #tpu.memory_space<vmem>>, vector<128x128xbf16>
    %cst = arith.constant dense<0.000000e+00> : vector<128x128xf32>
    %6 = tpu.matmul %4, %5, %cst {dimension_numbers = #tpu.dot_dimension_numbers<[1], [0], [0], [1], [0, 0, 1, 1], [], []>} : vector<128x128xbf16>, vector<128x128xbf16>, vector<128x128xf32> -> vector<128x128xf32>
    %7 = arith.addf %3, %6 : vector<128x128xf32>
    %c0_6 = arith.constant 0 : index
    %c0_7 = arith.constant 0 : index
    %8 = vector.load %arg6[%c0_6, %c0_7] : memref<128x128xf32, #tpu.memory_space<vmem>>, vector<128x128xf32>
    tpu.vector_store %arg6[%c0_6, %c0_7], %7 {strides = array<i32>} : memref<128x128xf32, #tpu.memory_space<vmem>>, vector<128x128xf32>,
    %c0_i32_8 = arith.constant 0 : i32
    %9 = arith.cmpi eq, %arg1, %c0_i32_8 : i32
    %10 = arith.extui %9 : i1 to i32
    %c0_i32_9 = arith.constant 0 : i32
    %11 = arith.cmpi ne, %10, %c0_i32_9 : i32
    scf.if %11 {
      %c0_10 = arith.constant 0 : index
      %c0_11 = arith.constant 0 : index
      %12 = vector.load %arg4[%c0_10, %c0_11] : memref<128x1xf32, #tpu.memory_space<vmem>>, vector<128x1xf32>
      %c0_12 = arith.constant 0 : index
      %c0_13 = arith.constant 0 : index
      %13 = vector.load %arg6[%c0_12, %c0_13] : memref<128x128xf32, #tpu.memory_space<vmem>>, vector<128x128xf32>
      %14 = vector.broadcast %12 : vector<128x1xf32> to vector<128x128xf32>
      %15 = arith.mulf %14, %13 : vector<128x128xf32>
      %16 = arith.truncf %15 : vector<128x128xf32> to vector<128x128xbf16>
      %c0_14 = arith.constant 0 : index
      %c0_15 = arith.constant 0 : index
      %17 = vector.load %arg5[%c0_14, %c0_15] : memref<128x128xbf16, #tpu.memory_space<vmem>>, vector<128x128xbf16>
      tpu.vector_store %arg5[%c0_14, %c0_15], %16 {strides = array<i32>} : memref<128x128xbf16, #tpu.memory_space<vmem>>, vector<128x128xbf16>,
    } else {
    }
    return
  }
  func.func @transform_0(%arg0: i32, %arg1: i32) -> (i32, i32) {
    %c0_i32 = arith.constant 0 : i32
    return %arg0, %arg1 : i32, i32
  }
  func.func @transform_1(%arg0: i32, %arg1: i32) -> (i32, i32) {
    %c0_i32 = arith.constant 0 : i32
    %c0_i32_0 = arith.constant 0 : i32
    return %arg1, %c0_i32 : i32, i32
  }
  func.func @transform_2(%arg0: i32, %arg1: i32) -> (i32, i32) {
    %c0_i32 = arith.constant 0 : i32
    %c0_i32_0 = arith.constant 0 : i32
    return %arg0, %c0_i32 : i32, i32
  }
  func.func @transform_3(%arg0: i32, %arg1: i32) -> (i32, i32) {
    %c0_i32 = arith.constant 0 : i32
    %c0_i32_0 = arith.constant 0 : i32
    return %arg0, %c0_i32 : i32, i32
  }
}

module attributes {stable_mosaic.version = 11 : i64} {
  func.func @_gather_loss_kernel(%arg0: memref<24x1xi32, #tpu.memory_space<vmem>>, %arg1: memref<8x1xf32, #tpu.memory_space<vmem>>, %arg2: memref<128x128xbf16, #tpu.memory_space<vmem>>, %arg3: memref<1x1xf32, #tpu.memory_space<vmem>>) attributes {dimension_semantics = [], scalar_prefetch = 0 : i64, scratch_operands = 0 : i64, tpu.core_type = #tpu.core_type<tc>} {
    %0 = tpu.iota {dimensions = array<i32: 1>} : vector<24x128xi32>
    %c0 = arith.constant 0 : index
    %c0_0 = arith.constant 0 : index
    %1 = vector.load %arg0[%c0, %c0_0] : memref<24x1xi32, #tpu.memory_space<vmem>>, vector<24x1xi32>
    %2 = vector.broadcast %1 : vector<24x1xi32> to vector<24x128xi32>
    %3 = arith.cmpi eq, %2, %0 : vector<24x128xi32>
    %4 = arith.extui %3 : vector<24x128xi1> to vector<24x128xi32>
    %5 = arith.sitofp %4 : vector<24x128xi32> to vector<24x128xf32>
    %6 = arith.truncf %5 : vector<24x128xf32> to vector<24x128xbf16>
    %c0_1 = arith.constant 0 : index
    %c0_2 = arith.constant 0 : index
    %7 = vector.load %arg2[%c0_1, %c0_2] : memref<128x128xbf16, #tpu.memory_space<vmem>>, vector<128x128xbf16>
    %cst = arith.constant dense<0.000000e+00> : vector<24x128xf32>
    %8 = tpu.matmul %6, %7, %cst {dimension_numbers = #tpu.dot_dimension_numbers<[1], [0], [0], [1], [0, 0, 1, 1], [], []>} : vector<24x128xbf16>, vector<128x128xbf16>, vector<24x128xf32> -> vector<24x128xf32>
    %9 = vector.extract_strided_slice %8 {offsets = [0, 0], sizes = [8, 128], strides = [1, 1]} : vector<24x128xf32> to vector<8x128xf32>
    %10 = vector.extract_strided_slice %8 {offsets = [8, 0], sizes = [8, 128], strides = [1, 1]} : vector<24x128xf32> to vector<8x128xf32>
    %11 = vector.extract_strided_slice %8 {offsets = [16, 0], sizes = [8, 128], strides = [1, 1]} : vector<24x128xf32> to vector<8x128xf32>
    %12 = arith.mulf %9, %9 : vector<8x128xf32>
    %cst_3 = arith.constant dense<0.000000e+00> : vector<8xf32>
    %13 = vector.multi_reduction <add>, %12, %cst_3 [1] : vector<8x128xf32> to vector<8xf32>
    %14 = vector.shape_cast %13 : vector<8xf32> to vector<8x1xf32>
    %15 = arith.mulf %10, %10 : vector<8x128xf32>
    %cst_4 = arith.constant dense<0.000000e+00> : vector<8xf32>
    %16 = vector.multi_reduction <add>, %15, %cst_4 [1] : vector<8x128xf32> to vector<8xf32>
    %17 = vector.shape_cast %16 : vector<8xf32> to vector<8x1xf32>
    %18 = arith.mulf %11, %11 : vector<8x128xf32>
    %cst_5 = arith.constant dense<0.000000e+00> : vector<8xf32>
    %19 = vector.multi_reduction <add>, %18, %cst_5 [1] : vector<8x128xf32> to vector<8xf32>
    %20 = vector.shape_cast %19 : vector<8xf32> to vector<8x1xf32>
    %21 = arith.mulf %9, %10 : vector<8x128xf32>
    %cst_6 = arith.constant dense<0.000000e+00> : vector<8xf32>
    %22 = vector.multi_reduction <add>, %21, %cst_6 [1] : vector<8x128xf32> to vector<8xf32>
    %23 = vector.shape_cast %22 : vector<8xf32> to vector<8x1xf32>
    %24 = arith.mulf %9, %11 : vector<8x128xf32>
    %cst_7 = arith.constant dense<0.000000e+00> : vector<8xf32>
    %25 = vector.multi_reduction <add>, %24, %cst_7 [1] : vector<8x128xf32> to vector<8xf32>
    %26 = vector.shape_cast %25 : vector<8xf32> to vector<8x1xf32>
    %27 = math.sqrt %14 : vector<8x1xf32>
    %28 = math.sqrt %17 : vector<8x1xf32>
    %29 = arith.mulf %27, %28 : vector<8x1xf32>
    %cst_8 = arith.constant 9.99999993E-9 : f32
    %30 = vector.broadcast %cst_8 : f32 to vector<8x1xf32>
    %31 = arith.maximumf %29, %30 : vector<8x1xf32>
    %32 = arith.divf %23, %31 : vector<8x1xf32>
    %33 = math.sqrt %20 : vector<8x1xf32>
    %34 = arith.mulf %27, %33 : vector<8x1xf32>
    %cst_9 = arith.constant 9.99999993E-9 : f32
    %35 = vector.broadcast %cst_9 : f32 to vector<8x1xf32>
    %36 = arith.maximumf %34, %35 : vector<8x1xf32>
    %37 = arith.divf %26, %36 : vector<8x1xf32>
    %38 = arith.subf %37, %32 : vector<8x1xf32>
    %cst_10 = arith.constant 5.000000e+00 : f32
    %39 = vector.broadcast %cst_10 : f32 to vector<8x1xf32>
    %40 = arith.mulf %38, %39 : vector<8x1xf32>
    %cst_11 = arith.constant 0.000000e+00 : f32
    %41 = vector.broadcast %cst_11 : f32 to vector<8x1xf32>
    %42 = arith.maximumf %40, %41 : vector<8x1xf32>
    %43 = math.absf %40 : vector<8x1xf32>
    %cst_12 = arith.constant 0.000000e+00 : f32
    %44 = vector.broadcast %cst_12 : f32 to vector<8x1xf32>
    %45 = arith.subf %44, %43 : vector<8x1xf32>
    %46 = math.exp %45 : vector<8x1xf32>
    %cst_13 = arith.constant 1.000000e+00 : f32
    %47 = vector.broadcast %cst_13 : f32 to vector<8x1xf32>
    %48 = arith.addf %47, %46 : vector<8x1xf32>
    %49 = math.log %48 : vector<8x1xf32>
    %50 = arith.addf %42, %49 : vector<8x1xf32>
    %c0_14 = arith.constant 0 : index
    %c0_15 = arith.constant 0 : index
    %51 = vector.load %arg1[%c0_14, %c0_15] : memref<8x1xf32, #tpu.memory_space<vmem>>, vector<8x1xf32>
    %52 = arith.mulf %50, %51 : vector<8x1xf32>
    %cst_16 = arith.constant dense<0.000000e+00> : vector<1xf32>
    %53 = vector.multi_reduction <add>, %52, %cst_16 [0] : vector<8x1xf32> to vector<1xf32>
    %54 = vector.shape_cast %53 : vector<1xf32> to vector<1x1xf32>
    %c0_17 = arith.constant 0 : index
    %c0_18 = arith.constant 0 : index
    %55 = vector.load %arg3[%c0_17, %c0_18] : memref<1x1xf32, #tpu.memory_space<vmem>>, vector<1x1xf32>
    tpu.vector_store %arg3[%c0_17, %c0_18], %54 {strides = array<i32>} : memref<1x1xf32, #tpu.memory_space<vmem>>, vector<1x1xf32>,
    return
  }
}

</mosaic_0001>

<llo_original>
// kernel: edgepred_gprompt_forward.7
$region0: #{edgepred_gprompt_forward.7}
  #allocation0 [shape = 'u32[]', space=smem, size = 0x4, offset = 0x4, fixed_abs, tag = 'smem constant byte address 0x4 - core index']
  #allocation1 [shape = 'u32[72,128]{1,0:T(1,128)}', space=vmem, size = 0x9000, scoped, tag = 'internal scratch']
  %s0 = inlined_call_operand.vmem [shape: s32[24,1], index: 0, kind: input, shape index: {}]
  %s1 = inlined_call_operand.vmem [shape: f32[8,1], index: 1, kind: input, shape index: {}]
  %s2 = inlined_call_operand.vmem [shape: bf16[128,128], index: 2, kind: input, shape index: {}]
  %s3 = inlined_call_operand.hbm [shape: f32[1,1], index: 3, kind: output, shape index: {}]
  %s4 = sld [smem:[#allocation0]]
  $region22: #{edgepred_gprompt_forward.7} parent=0
    _
  %s6 = ssub.s32 1, %s4
  %s7 = scalar_select 0, %s6, %s4
  $region1: #{edgepred_gprompt_forward.7} parent=0
    #allocation2 [shape = 'u8[512]{0}', space=vmem, size = 0x400, scoped, tag = 'output window, operand 0, single buffered']
    #allocation3 [shape = 's32[1]{0}', space=sflag, size = 0x4, scoped, tag = 'scoped memory for edgepred_gprompt_forward.7']
    %8 = vsyncpa [#allocation3], 0
    // Predicated region
    $region2: #{edgepred_gprompt_forward.7} parent=1 // pred_check
      _
    $region3: #{edgepred_gprompt_forward.7} parent=1 // pred_check_branch
      %10 = sbr.rel (0) target = $region5
    $region4: #{edgepred_gprompt_forward.7} parent=1 // pred_region
      _
    $region5: #{edgepred_gprompt_forward.7} parent=1 // pred_fallthru
      _
    // Predicated region
    $region6: #{edgepred_gprompt_forward.7} parent=1 // pred_check
      _
    $region7: #{edgepred_gprompt_forward.7} parent=1 // pred_check_branch
      %12 = sbr.rel (0) target = $region9
    $region8: #{edgepred_gprompt_forward.7} parent=1 // pred_region
      _
    $region9: #{edgepred_gprompt_forward.7} parent=1 // pred_fallthru
      _
    // Predicated region
    $region10: #{edgepred_gprompt_forward.7} parent=1 // pred_check
      _
    $region11: #{edgepred_gprompt_forward.7} parent=1 // pred_check_branch
      %14 = sbr.rel (0) target = $region13
    $region12: #{edgepred_gprompt_forward.7} parent=1 // pred_region
      _
    $region13: #{edgepred_gprompt_forward.7} parent=1 // pred_fallthru
      _
    %v15 = vlaneseq
    %v16 = vand.u32 %v15, 127
    %v17 = vld [vmem:[%s0] sm:$0xff]
    %v18 = vld [vmem:[%s0 + $0x8] sm:$0xff]
    %v19 = vld [vmem:[%s0 + $0x10] sm:$0xff]
    %20 = vset.pattern.permute.xlu0 0
    %21 = vperm.xlu0 %20, %v17
    %v22 = vpop.permute.xlu0 %21
    %23 = vset.pattern.permute.xlu0 0
    %24 = vperm.xlu0 %23, %v18
    %v25 = vpop.permute.xlu0 %24
    %26 = vset.pattern.permute.xlu0 0
    %27 = vperm.xlu0 %26, %v19
    %v28 = vpop.permute.xlu0 %27
    %vm29 = vcmp.eq.s32.totalorder %v22, %v16
    %vm30 = vcmp.eq.s32.totalorder %v25, %v16
    %vm31 = vcmp.eq.s32.totalorder %v28, %v16
    %v32 = vsel %vm29, 1, 0
    %v33 = vsel %vm30, 1, 0
    %v34 = vsel %vm31, 1, 0
    %v35 = vcvt.s32.f32 %v32
    %v36 = vcvt.s32.f32 %v33
    %v37 = vcvt.s32.f32 %v34
    %v38 = vpack.c.bf16 %v36, %v35
    %v39 = vpack.c.bf16 %v37, %v37
    %v40 = vld [vmem:[%s2] sm:$0xf]
    %v41 = vld [vmem:[%s2 + $0x4] sm:$0xf]
    %v42 = vld [vmem:[%s2 + $0x8] sm:$0xf]
    %v43 = vld [vmem:[%s2 + $0xc] sm:$0xf]
    %v44 = vld [vmem:[%s2 + $0x10] sm:$0xf]
    %v45 = vld [vmem:[%s2 + $0x14] sm:$0xf]
    %v46 = vld [vmem:[%s2 + $0x18] sm:$0xf]
    %v47 = vld [vmem:[%s2 + $0x1c] sm:$0xf]
    %v48 = vld [vmem:[%s2 + $0x20] sm:$0xf]
    %v49 = vld [vmem:[%s2 + $0x24] sm:$0xf]
    %v50 = vld [vmem:[%s2 + $0x28] sm:$0xf]
    %v51 = vld [vmem:[%s2 + $0x2c] sm:$0xf]
    %v52 = vld [vmem:[%s2 + $0x30] sm:$0xf]
    %v53 = vld [vmem:[%s2 + $0x34] sm:$0xf]
    %v54 = vld [vmem:[%s2 + $0x38] sm:$0xf]
    %v55 = vld [vmem:[%s2 + $0x3c] sm:$0xf]
    %v72 = vunpack.c.l.b16 %v40
    %v73 = vunpack.c.l.b16 %v41
    %v74 = vunpack.c.l.b16 %v42
    %v75 = vunpack.c.l.b16 %v43
    %v76 = vunpack.c.l.b16 %v44
    %v77 = vunpack.c.l.b16 %v45
    %v78 = vunpack.c.l.b16 %v46
    %v79 = vunpack.c.l.b16 %v47
    %v80 = vunpack.c.l.b16 %v48
    %v81 = vunpack.c.l.b16 %v49
    %v82 = vunpack.c.l.b16 %v50
    %v83 = vunpack.c.l.b16 %v51
    %v84 = vunpack.c.l.b16 %v52
    %v85 = vunpack.c.l.b16 %v53
    %v86 = vunpack.c.l.b16 %v54
    %v87 = vunpack.c.l.b16 %v55
    %v88 = vpack.c.b16 %v73, %v72
    %v89 = vpack.c.b16 %v75, %v74
    %v90 = vpack.c.b16 %v77, %v76
    %v91 = vpack.c.b16 %v79, %v78
    %v92 = vpack.c.b16 %v81, %v80
    %v93 = vpack.c.b16 %v83, %v82
    %v94 = vpack.c.b16 %v85, %v84
    %v95 = vpack.c.b16 %v87, %v86
    %104 = vmatpush.bf16.msra.mxu0 %v95
    %105 = vmatpush.bf16.msra.mxu0 %v94
    %106 = vmatpush.bf16.msra.mxu0 %v93
    %107 = vmatpush.bf16.msra.mxu0 %v92
    %108 = vmatpush.bf16.msra.mxu0 %v91
    %109 = vmatpush.bf16.msra.mxu0 %v90
    %110 = vmatpush.bf16.msra.mxu0 %v89
    %111 = vmatpush.bf16.msra.mxu0 %v88
    %112 = vmatmul.bf16.gmra.mxu0 %v38
    %v113 = vpop.f32.mrf.mxu0
    %v114 = vadd.f32 0.0, %v113
    %v115 = vpop.f32.mrf.mxu0
    %v116 = vadd.f32 0.0, %v115
    %117 = vmatmul.bf16.gmra.mxu0 %v39
    %v118 = vpop.f32.mrf.mxu0
    %v119 = vadd.f32 0.0, %v118
    %v120 = vpop.f32.mrf.mxu0
    %121 = vdwg.mxu0
    %v122 = vmul.f32 %v114, %v114
    %123 = vadd.xlane.f32.xlu0 %v122
    %v124 = vpop.xlane.xlu0 %123
    %v125 = vmul.f32 %v116, %v116
    %126 = vadd.xlane.f32.xlu0 %v125
    %v127 = vpop.xlane.xlu0 %126
    %v128 = vmul.f32 %v119, %v119
    %129 = vadd.xlane.f32.xlu0 %v128
    %v130 = vpop.xlane.xlu0 %129
    %v131 = vmul.f32 %v114, %v116
    %132 = vadd.xlane.f32.xlu0 %v131
    %v133 = vpop.xlane.xlu0 %132
    %v134 = vmul.f32 %v114, %v119
    %135 = vadd.xlane.f32.xlu0 %v134
    %v136 = vpop.xlane.xlu0 %135
    %v137 = vrsqrt.pop %v124
    %v138 = vmul.f32 %v137, %v124
    %v139 = vmul.f32 %v138, %v137
    %v140 = vmul.f32 0.5, %v139
    %v141 = vsub.f32 1.5, %v140
    %v142 = vmul.f32 %v137, %v141
    %v143 = vmul.f32 %v124, %v142
    %vm144 = vcmp.eq.f32.partialorder %v124, inf
    %v145 = vsel %vm144, %v124, %v143
    %vm146 = vcmp.eq.f32.partialorder %v124, 0.0
    %v147 = vand.u32 %v124, 2147483648
    %v148 = vsel %vm146, %v147, %v145
    %v149 = vrsqrt.pop %v127
    %v150 = vmul.f32 %v149, %v127
    %v151 = vmul.f32 %v150, %v149
    %v152 = vmul.f32 0.5, %v151
    %v153 = vsub.f32 1.5, %v152
    %v154 = vmul.f32 %v149, %v153
    %v155 = vmul.f32 %v127, %v154
    %vm156 = vcmp.eq.f32.partialorder %v127, inf
    %v157 = vsel %vm156, %v127, %v155
    %vm158 = vcmp.eq.f32.partialorder %v127, 0.0
    %v159 = vand.u32 %v127, 2147483648
    %v160 = vsel %vm158, %v159, %v157
    %v161 = vmul.f32 %v148, %v160
    %v162 = vmax.f32 %v161, 1e-08
    %v163 = vrcp.pop %v162
    %v164 = vmul.f32 %v162, %v163
    %v165 = vsub.f32 1.0, %v164
    %v166 = vmul.f32 %v163, %v165
    %v167 = vadd.f32 %v163, %v166
    %vm168 = vweird.f32 %v162
    %vm169 = vweird.f32 %v163
    %vm170 = vmor %vm168, %vm169
    %v171 = vsel %vm170, %v163, %v167
    %v172 = vand.u32 2147483647, %v162
    %vm173 = vcmp.eq.f32.partialorder %v172, 8.507059e+37
    %v174 = vand.u32 %v162, 2147483648
    %v175 = vor.u32 1.1754944e-38, %v174
    %v176 = vsel %vm173, %v175, %v171
    %v177 = vmul.f32 %v133, %v176
    %v178 = vrsqrt.pop %v130
    %v179 = vmul.f32 %v178, %v130
    %v180 = vmul.f32 %v179, %v178
    %v181 = vmul.f32 0.5, %v180
    %v182 = vsub.f32 1.5, %v181
    %v183 = vmul.f32 %v178, %v182
    %v184 = vmul.f32 %v130, %v183
    %vm185 = vcmp.eq.f32.partialorder %v130, inf
    %v186 = vsel %vm185, %v130, %v184
    %vm187 = vcmp.eq.f32.partialorder %v130, 0.0
    %v188 = vand.u32 %v130, 2147483648
    %v189 = vsel %vm187, %v188, %v186
    %v190 = vmul.f32 %v148, %v189
    %v191 = vmax.f32 %v190, 1e-08
    %v192 = vrcp.pop %v191
    %v193 = vmul.f32 %v191, %v192
    %v194 = vsub.f32 1.0, %v193
    %v195 = vmul.f32 %v192, %v194
    %v196 = vadd.f32 %v192, %v195
    %vm197 = vweird.f32 %v191
    %vm198 = vweird.f32 %v192
    %vm199 = vmor %vm197, %vm198
    %v200 = vsel %vm199, %v192, %v196
    %v201 = vand.u32 2147483647, %v191
    %vm202 = vcmp.eq.f32.partialorder %v201, 8.507059e+37
    %v203 = vand.u32 %v191, 2147483648
    %v204 = vor.u32 1.1754944e-38, %v203
    %v205 = vsel %vm202, %v204, %v200
    %v206 = vmul.f32 %v136, %v205
    %v207 = vsub.f32 %v206, %v177
    %v208 = vmul.f32 %v207, 5.0
    %v209 = vmax.f32 %v208, 0.0
    %v210 = vand.u32 2147483647, %v208
    %v211 = vsub.f32 0.0, %v210
    %v212 = vmul.f32 %v211, 1.442695
    %v213 = vpow.pop %v212
    %v214 = vadd.f32 %v213, 1.0
    %v215 = vlog2.pop %v214
    %v216 = vmul.f32 %v215, 0.6931472
    %v217 = vadd.f32 %v209, %v216
    %v218 = vld [vmem:[%s1] sm:$0xff]
    %v219 = vmul.f32 %v217, %v218
    %vm220 = vcmask 7168
    %v221 = vsel %vm220, %v219, 0.0
    %v222 = vrot.slane %v221, 4
    %v223 = vadd.f32 %v221, %v222
    %v224 = vrot.slane %v223, 2
    %v225 = vadd.f32 %v223, %v224
    %v226 = vrot.slane %v225, 1
    %v227 = vadd.f32 %v225, %v226
    %vm228 = vcmask 0
    %229 = vst.msk [vmem:[#allocation2] sm:$0x1] %vm228, %v227
    // Predicated region
    $region14: #{edgepred_gprompt_forward.7} parent=1 // pred_check
      _
    $region15: #{edgepred_gprompt_forward.7} parent=1 // pred_check_branch
      %231 = sbr.rel (0) target = $region17
    $region16: #{edgepred_gprompt_forward.7} parent=1 // pred_region
      %233 = vsyncadd [#allocation3], 0
      %s235 = sshll.u32 [#allocation2], 4
      %s236 = int_to_ptr.vmem [resolvable:$true] %s235
      %s237 = sshll.u32 %s3, 4
      %s238 = int_to_ptr.hbm [resolvable:$true] %s237
      %240 = dma.vmem_to_hbm [thread:$0]  %s236, 16, %s238, [#allocation3]
    $region17: #{edgepred_gprompt_forward.7} parent=1 // pred_fallthru
      _
    // Predicated region
    $region18: #{edgepred_gprompt_forward.7} parent=1 // pred_check
      _
    $region19: #{edgepred_gprompt_forward.7} parent=1 // pred_check_branch
      %242 = sbr.rel (0) target = $region21
    $region20: #{edgepred_gprompt_forward.7} parent=1 // pred_region
      %244 = dma.done [#allocation3], 16
    $region21: #{edgepred_gprompt_forward.7} parent=1 // pred_fallthru
      _
    %245 = vsyncpa [#allocation3], 1

// kernel: edgepred_gprompt_forward.5
$region0: #{edgepred_gprompt_forward.5}
  #allocation0 [shape = 'u32[]', space=smem, size = 0x4, offset = 0x4, fixed_abs, tag = 'smem constant byte address 0x4 - core index']
  #allocation1 [shape = 'u32[72,128]{1,0:T(1,128)}', space=vmem, size = 0x9000, scoped, tag = 'internal scratch']
  #allocation2 [shape = 'f32[128,128]{1,0:T(8,128)}', space=vmem, size = 0x10000, scoped, tag = 'scratch operand']
  %s0 = inlined_call_operand.vmem [shape: bf16[128,128], index: 0, kind: input, shape index: {}]
  %s1 = inlined_call_operand.vmem [shape: bf16[128,128], index: 1, kind: input, shape index: {}]
  %s2 = inlined_call_operand.vmem [shape: f32[128,1], index: 2, kind: input, shape index: {}]
  %s3 = inlined_call_operand.vmem [shape: bf16[128,128], index: 3, kind: output, shape index: {}]
  %s4 = sld [smem:[#allocation0]]
  $region30: #{edgepred_gprompt_forward.5} parent=0
    _
  %s6 = ssub.s32 1, %s4
  %s7 = scalar_select 0, %s6, %s4
  // Predicated region
  $region2: #{edgepred_gprompt_forward.5} parent=0 // pred_check
    _
  $region3: #{edgepred_gprompt_forward.5} parent=0 // pred_check_branch
    %9 = sbr.rel (0) target = $region5
  $region4: #{edgepred_gprompt_forward.5} parent=0 // pred_region
    _
  $region5: #{edgepred_gprompt_forward.5} parent=0 // pred_fallthru
    _
  // Predicated region
  $region6: #{edgepred_gprompt_forward.5} parent=0 // pred_check
    _
  $region7: #{edgepred_gprompt_forward.5} parent=0 // pred_check_branch
    %11 = sbr.rel (0) target = $region9
  $region8: #{edgepred_gprompt_forward.5} parent=0 // pred_region
    _
  $region9: #{edgepred_gprompt_forward.5} parent=0 // pred_fallthru
    _
  // Predicated region
  $region10: #{edgepred_gprompt_forward.5} parent=0 // pred_check
    _
  $region11: #{edgepred_gprompt_forward.5} parent=0 // pred_check_branch
    %13 = sbr.rel (0) target = $region13
  $region12: #{edgepred_gprompt_forward.5} parent=0 // pred_region
    _
  $region13: #{edgepred_gprompt_forward.5} parent=0 // pred_fallthru
    _
  %p14 = scmp.eq.s32.totalorder 0, 0
  // Predicated region
  $region14: #{edgepred_gprompt_forward.5} parent=0 // pred_check
    %p15 = pneg %p14
  $region15: #{edgepred_gprompt_forward.5} parent=0 // pred_check_branch
    %17 = sbr.rel (%p15) target = $region17
  $region16: #{edgepred_gprompt_forward.5} parent=0 // pred_region
    %18 = vst [vmem:[#allocation2] sm:$0xff] 0.0
    %19 = vst [vmem:[#allocation2 + $0x8] sm:$0xff] 0.0
    %20 = vst [vmem:[#allocation2 + $0x10] sm:$0xff] 0.0
    %21 = vst [vmem:[#allocation2 + $0x18] sm:$0xff] 0.0
    %22 = vst [vmem:[#allocation2 + $0x20] sm:$0xff] 0.0
    %23 = vst [vmem:[#allocation2 + $0x28] sm:$0xff] 0.0
    %24 = vst [vmem:[#allocation2 + $0x30] sm:$0xff] 0.0
    %25 = vst [vmem:[#allocation2 + $0x38] sm:$0xff] 0.0
    %26 = vst [vmem:[#allocation2 + $0x40] sm:$0xff] 0.0
    %27 = vst [vmem:[#allocation2 + $0x48] sm:$0xff] 0.0
    %28 = vst [vmem:[#allocation2 + $0x50] sm:$0xff] 0.0
    %29 = vst [vmem:[#allocation2 + $0x58] sm:$0xff] 0.0
    %30 = vst [vmem:[#allocation2 + $0x60] sm:$0xff] 0.0
    %31 = vst [vmem:[#allocation2 + $0x68] sm:$0xff] 0.0
    %32 = vst [vmem:[#allocation2 + $0x70] sm:$0xff] 0.0
    %33 = vst [vmem:[#allocation2 + $0x78] sm:$0xff] 0.0
  $region17: #{edgepred_gprompt_forward.5} parent=0 // pred_fallthru
    _
  %v34 = vld [vmem:[#allocation2] sm:$0xff]
  %v35 = vld [vmem:[#allocation2 + $0x8] sm:$0xff]
  %v36 = vld [vmem:[#allocation2 + $0x10] sm:$0xff]
  %v37 = vld [vmem:[#allocation2 + $0x18] sm:$0xff]
  %v38 = vld [vmem:[#allocation2 + $0x20] sm:$0xff]
  %v39 = vld [vmem:[#allocation2 + $0x28] sm:$0xff]
  %v40 = vld [vmem:[#allocation2 + $0x30] sm:$0xff]
  %v41 = vld [vmem:[#allocation2 + $0x38] sm:$0xff]
  %v42 = vld [vmem:[#allocation2 + $0x40] sm:$0xff]
  %v43 = vld [vmem:[#allocation2 + $0x48] sm:$0xff]
  %v44 = vld [vmem:[#allocation2 + $0x50] sm:$0xff]
  %v45 = vld [vmem:[#allocation2 + $0x58] sm:$0xff]
  %v46 = vld [vmem:[#allocation2 + $0x60] sm:$0xff]
  %v47 = vld [vmem:[#allocation2 + $0x68] sm:$0xff]
  %v48 = vld [vmem:[#allocation2 + $0x70] sm:$0xff]
  %v49 = vld [vmem:[#allocation2 + $0x78] sm:$0xff]
  %v50 = vld [vmem:[%s0] sm:$0xf]
  %v51 = vld [vmem:[%s0 + $0x4] sm:$0xf]
  %v52 = vld [vmem:[%s0 + $0x8] sm:$0xf]
  %v53 = vld [vmem:[%s0 + $0xc] sm:$0xf]
  %v54 = vld [vmem:[%s0 + $0x10] sm:$0xf]
  %v55 = vld [vmem:[%s0 + $0x14] sm:$0xf]
  %v56 = vld [vmem:[%s0 + $0x18] sm:$0xf]
  %v57 = vld [vmem:[%s0 + $0x1c] sm:$0xf]
  %v58 = vld [vmem:[%s0 + $0x20] sm:$0xf]
  %v59 = vld [vmem:[%s0 + $0x24] sm:$0xf]
  %v60 = vld [vmem:[%s0 + $0x28] sm:$0xf]
  %v61 = vld [vmem:[%s0 + $0x2c] sm:$0xf]
  %v62 = vld [vmem:[%s0 + $0x30] sm:$0xf]
  %v63 = vld [vmem:[%s0 + $0x34] sm:$0xf]
  %v64 = vld [vmem:[%s0 + $0x38] sm:$0xf]
  %v65 = vld [vmem:[%s0 + $0x3c] sm:$0xf]
  %v66 = vld [vmem:[%s1] sm:$0xf]
  %v67 = vld [vmem:[%s1 + $0x4] sm:$0xf]
  %v68 = vld [vmem:[%s1 + $0x8] sm:$0xf]
  %v69 = vld [vmem:[%s1 + $0xc] sm:$0xf]
  %v70 = vld [vmem:[%s1 + $0x10] sm:$0xf]
  %v71 = vld [vmem:[%s1 + $0x14] sm:$0xf]
  %v72 = vld [vmem:[%s1 + $0x18] sm:$0xf]
  %v73 = vld [vmem:[%s1 + $0x1c] sm:$0xf]
  %v74 = vld [vmem:[%s1 + $0x20] sm:$0xf]
  %v75 = vld [vmem:[%s1 + $0x24] sm:$0xf]
  %v76 = vld [vmem:[%s1 + $0x28] sm:$0xf]
  %v77 = vld [vmem:[%s1 + $0x2c] sm:$0xf]
  %v78 = vld [vmem:[%s1 + $0x30] sm:$0xf]
  %v79 = vld [vmem:[%s1 + $0x34] sm:$0xf]
  %v80 = vld [vmem:[%s1 + $0x38] sm:$0xf]
  %v81 = vld [vmem:[%s1 + $0x3c] sm:$0xf]
  %v98 = vunpack.c.l.b16 %v50
  %v99 = vunpack.c.l.b16 %v51
  %v100 = vunpack.c.l.b16 %v52
  %v101 = vunpack.c.l.b16 %v53
  %v102 = vunpack.c.l.b16 %v54
  %v103 = vunpack.c.l.b16 %v55
  %v104 = vunpack.c.l.b16 %v56
  %v105 = vunpack.c.l.b16 %v57
  %v106 = vunpack.c.l.b16 %v58
  %v107 = vunpack.c.l.b16 %v59
  %v108 = vunpack.c.l.b16 %v60
  %v109 = vunpack.c.l.b16 %v61
  %v110 = vunpack.c.l.b16 %v62
  %v111 = vunpack.c.l.b16 %v63
  %v112 = vunpack.c.l.b16 %v64
  %v113 = vunpack.c.l.b16 %v65
  %v114 = vpack.c.b16 %v99, %v98
  %v115 = vpack.c.b16 %v101, %v100
  %v116 = vpack.c.b16 %v103, %v102
  %v117 = vpack.c.b16 %v105, %v104
  %v118 = vpack.c.b16 %v107, %v106
  %v119 = vpack.c.b16 %v109, %v108
  %v120 = vpack.c.b16 %v111, %v110
  %v121 = vpack.c.b16 %v113, %v112
  %v146 = vunpack.c.l.b16 %v66
  %v147 = vunpack.c.l.b16 %v67
  %v148 = vunpack.c.l.b16 %v68
  %v149 = vunpack.c.l.b16 %v69
  %v150 = vunpack.c.l.b16 %v70
  %v151 = vunpack.c.l.b16 %v71
  %v152 = vunpack.c.l.b16 %v72
  %v153 = vunpack.c.l.b16 %v73
  %v154 = vunpack.c.l.b16 %v74
  %v155 = vunpack.c.l.b16 %v75
  %v156 = vunpack.c.l.b16 %v76
  %v157 = vunpack.c.l.b16 %v77
  %v158 = vunpack.c.l.b16 %v78
  %v159 = vunpack.c.l.b16 %v79
  %v160 = vunpack.c.l.b16 %v80
  %v161 = vunpack.c.l.b16 %v81
  %v162 = vpack.c.b16 %v147, %v146
  %v163 = vpack.c.b16 %v149, %v148
  %v164 = vpack.c.b16 %v151, %v150
  %v165 = vpack.c.b16 %v153, %v152
  %v166 = vpack.c.b16 %v155, %v154
  %v167 = vpack.c.b16 %v157, %v156
  %v168 = vpack.c.b16 %v159, %v158
  %v169 = vpack.c.b16 %v161, %v160
  %178 = vmatpush.bf16.msra.mxu0 %v169
  %179 = vmatpush.bf16.msra.mxu0 %v168
  %180 = vmatpush.bf16.msra.mxu0 %v167
  %181 = vmatpush.bf16.msra.mxu0 %v166
  %182 = vmatpush.bf16.msra.mxu0 %v165
  %183 = vmatpush.bf16.msra.mxu0 %v164
  %184 = vmatpush.bf16.msra.mxu0 %v163
  %185 = vmatpush.bf16.msra.mxu0 %v162
  %186 = vmatmul.bf16.gmra.mxu0 %v114
  %v187 = vpop.f32.mrf.mxu0
  %v188 = vadd.f32 0.0, %v187
  %v189 = vpop.f32.mrf.mxu0
  %v190 = vadd.f32 0.0, %v189
  %191 = vmatmul.bf16.gmra.mxu0 %v115
  %v192 = vpop.f32.mrf.mxu0
  %v193 = vadd.f32 0.0, %v192
  %v194 = vpop.f32.mrf.mxu0
  %v195 = vadd.f32 0.0, %v194
  %196 = vmatmul.bf16.gmra.mxu0 %v116
  %v197 = vpop.f32.mrf.mxu0
  %v198 = vadd.f32 0.0, %v197
  %v199 = vpop.f32.mrf.mxu0
  %v200 = vadd.f32 0.0, %v199
  %201 = vmatmul.bf16.gmra.mxu0 %v117
  %v202 = vpop.f32.mrf.mxu0
  %v203 = vadd.f32 0.0, %v202
  %v204 = vpop.f32.mrf.mxu0
  %v205 = vadd.f32 0.0, %v204
  %206 = vmatmul.bf16.gmra.mxu0 %v118
  %v207 = vpop.f32.mrf.mxu0
  %v208 = vadd.f32 0.0, %v207
  %v209 = vpop.f32.mrf.mxu0
  %v210 = vadd.f32 0.0, %v209
  %211 = vmatmul.bf16.gmra.mxu0 %v119
  %v212 = vpop.f32.mrf.mxu0
  %v213 = vadd.f32 0.0, %v212
  %v214 = vpop.f32.mrf.mxu0
  %v215 = vadd.f32 0.0, %v214
  %216 = vmatmul.bf16.gmra.mxu0 %v120
  %v217 = vpop.f32.mrf.mxu0
  %v218 = vadd.f32 0.0, %v217
  %v219 = vpop.f32.mrf.mxu0
  %v220 = vadd.f32 0.0, %v219
  %221 = vmatmul.bf16.gmra.mxu0 %v121
  %v222 = vpop.f32.mrf.mxu0
  %v223 = vadd.f32 0.0, %v222
  %v224 = vpop.f32.mrf.mxu0
  %v225 = vadd.f32 0.0, %v224
  %226 = vdwg.mxu0
  %v227 = vadd.f32 %v34, %v188
  %v228 = vadd.f32 %v35, %v190
  %v229 = vadd.f32 %v36, %v193
  %v230 = vadd.f32 %v37, %v195
  %v231 = vadd.f32 %v38, %v198
  %v232 = vadd.f32 %v39, %v200
  %v233 = vadd.f32 %v40, %v203
  %v234 = vadd.f32 %v41, %v205
  %v235 = vadd.f32 %v42, %v208
  %v236 = vadd.f32 %v43, %v210
  %v237 = vadd.f32 %v44, %v213
  %v238 = vadd.f32 %v45, %v215
  %v239 = vadd.f32 %v46, %v218
  %v240 = vadd.f32 %v47, %v220
  %v241 = vadd.f32 %v48, %v223
  %v242 = vadd.f32 %v49, %v225
  %243 = vst [vmem:[#allocation2] sm:$0xff] %v227
  %244 = vst [vmem:[#allocation2 + $0x8] sm:$0xff] %v228
  %245 = vst [vmem:[#allocation2 + $0x10] sm:$0xff] %v229
  %246 = vst [vmem:[#allocation2 + $0x18] sm:$0xff] %v230
  %247 = vst [vmem:[#allocation2 + $0x20] sm:$0xff] %v231
  %248 = vst [vmem:[#allocation2 + $0x28] sm:$0xff] %v232
  %249 = vst [vmem:[#allocation2 + $0x30] sm:$0xff] %v233
  %250 = vst [vmem:[#allocation2 + $0x38] sm:$0xff] %v234
  %251 = vst [vmem:[#allocation2 + $0x40] sm:$0xff] %v235
  %252 = vst [vmem:[#allocation2 + $0x48] sm:$0xff] %v236
  %253 = vst [vmem:[#allocation2 + $0x50] sm:$0xff] %v237
  %254 = vst [vmem:[#allocation2 + $0x58] sm:$0xff] %v238
  %255 = vst [vmem:[#allocation2 + $0x60] sm:$0xff] %v239
  %256 = vst [vmem:[#allocation2 + $0x68] sm:$0xff] %v240
  %257 = vst [vmem:[#allocation2 + $0x70] sm:$0xff] %v241
  %258 = vst [vmem:[#allocation2 + $0x78] sm:$0xff] %v242
  // Predicated region
  $region18: #{edgepred_gprompt_forward.5} parent=0 // pred_check
    %p259 = pneg %p14
  $region19: #{edgepred_gprompt_forward.5} parent=0 // pred_check_branch
    %261 = sbr.rel (%p259) target = $region21
  $region20: #{edgepred_gprompt_forward.5} parent=0 // pred_region
    %v262 = vld [vmem:[%s2] sm:$0xff]
    %v263 = vld [vmem:[%s2 + $0x8] sm:$0xff]
    %v264 = vld [vmem:[%s2 + $0x10] sm:$0xff]
    %v265 = vld [vmem:[%s2 + $0x18] sm:$0xff]
    %v266 = vld [vmem:[%s2 + $0x20] sm:$0xff]
    %v267 = vld [vmem:[%s2 + $0x28] sm:$0xff]
    %v268 = vld [vmem:[%s2 + $0x30] sm:$0xff]
    %v269 = vld [vmem:[%s2 + $0x38] sm:$0xff]
    %v270 = vld [vmem:[%s2 + $0x40] sm:$0xff]
    %v271 = vld [vmem:[%s2 + $0x48] sm:$0xff]
    %v272 = vld [vmem:[%s2 + $0x50] sm:$0xff]
    %v273 = vld [vmem:[%s2 + $0x58] sm:$0xff]
    %v274 = vld [vmem:[%s2 + $0x60] sm:$0xff]
    %v275 = vld [vmem:[%s2 + $0x68] sm:$0xff]
    %v276 = vld [vmem:[%s2 + $0x70] sm:$0xff]
    %v277 = vld [vmem:[%s2 + $0x78] sm:$0xff]
    %v278 = vld [vmem:[#allocation2] sm:$0xff]
    %v279 = vld [vmem:[#allocation2 + $0x8] sm:$0xff]
    %v280 = vld [vmem:[#allocation2 + $0x10] sm:$0xff]
    %v281 = vld [vmem:[#allocation2 + $0x18] sm:$0xff]
    %v282 = vld [vmem:[#allocation2 + $0x20] sm:$0xff]
    %v283 = vld [vmem:[#allocation2 + $0x28] sm:$0xff]
    %v284 = vld [vmem:[#allocation2 + $0x30] sm:$0xff]
    %v285 = vld [vmem:[#allocation2 + $0x38] sm:$0xff]
    %v286 = vld [vmem:[#allocation2 + $0x40] sm:$0xff]
    %v287 = vld [vmem:[#allocation2 + $0x48] sm:$0xff]
    %v288 = vld [vmem:[#allocation2 + $0x50] sm:$0xff]
    %v289 = vld [vmem:[#allocation2 + $0x58] sm:$0xff]
    %v290 = vld [vmem:[#allocation2 + $0x60] sm:$0xff]
    %v291 = vld [vmem:[#allocation2 + $0x68] sm:$0xff]
    %v292 = vld [vmem:[#allocation2 + $0x70] sm:$0xff]
    %v293 = vld [vmem:[#allocation2 + $0x78] sm:$0xff]
    %295 = vset.pattern.permute.xlu0 0
    %296 = vperm.xlu0 %295, %v262
    %v297 = vpop.permute.xlu0 %296
    %300 = vset.pattern.permute.xlu0 0
    %301 = vperm.xlu0 %300, %v263
    %v302 = vpop.permute.xlu0 %301
    %305 = vset.pattern.permute.xlu0 0
    %306 = vperm.xlu0 %305, %v264
    %v307 = vpop.permute.xlu0 %306
    %310 = vset.pattern.permute.xlu0 0
    %311 = vperm.xlu0 %310, %v265
    %v312 = vpop.permute.xlu0 %311
    %315 = vset.pattern.permute.xlu0 0
    %316 = vperm.xlu0 %315, %v266
    %v317 = vpop.permute.xlu0 %316
    %320 = vset.pattern.permute.xlu0 0
    %321 = vperm.xlu0 %320, %v267
    %v322 = vpop.permute.xlu0 %321
    %325 = vset.pattern.permute.xlu0 0
    %326 = vperm.xlu0 %325, %v268
    %v327 = vpop.permute.xlu0 %326
    %330 = vset.pattern.permute.xlu0 0
    %331 = vperm.xlu0 %330, %v269
    %v332 = vpop.permute.xlu0 %331
    %335 = vset.pattern.permute.xlu0 0
    %336 = vperm.xlu0 %335, %v270
    %v337 = vpop.permute.xlu0 %336
    %340 = vset.pattern.permute.xlu0 0
    %341 = vperm.xlu0 %340, %v271
    %v342 = vpop.permute.xlu0 %341
    %345 = vset.pattern.permute.xlu0 0
    %346 = vperm.xlu0 %345, %v272
    %v347 = vpop.permute.xlu0 %346
    %350 = vset.pattern.permute.xlu0 0
    %351 = vperm.xlu0 %350, %v273
    %v352 = vpop.permute.xlu0 %351
    %355 = vset.pattern.permute.xlu0 0
    %356 = vperm.xlu0 %355, %v274
    %v357 = vpop.permute.xlu0 %356
    %360 = vset.pattern.permute.xlu0 0
    %361 = vperm.xlu0 %360, %v275
    %v362 = vpop.permute.xlu0 %361
    %365 = vset.pattern.permute.xlu0 0
    %366 = vperm.xlu0 %365, %v276
    %v367 = vpop.permute.xlu0 %366
    %370 = vset.pattern.permute.xlu0 0
    %371 = vperm.xlu0 %370, %v277
    %v372 = vpop.permute.xlu0 %371
    %v374 = vmul.f32 %v297, %v278
    %v375 = vmul.f32 %v302, %v279
    %v376 = vmul.f32 %v307, %v280
    %v377 = vmul.f32 %v312, %v281
    %v378 = vmul.f32 %v317, %v282
    %v379 = vmul.f32 %v322, %v283
    %v380 = vmul.f32 %v327, %v284
    %v381 = vmul.f32 %v332, %v285
    %v382 = vmul.f32 %v337, %v286
    %v383 = vmul.f32 %v342, %v287
    %v384 = vmul.f32 %v347, %v288
    %v385 = vmul.f32 %v352, %v289
    %v386 = vmul.f32 %v357, %v290
    %v387 = vmul.f32 %v362, %v291
    %v388 = vmul.f32 %v367, %v292
    %v389 = vmul.f32 %v372, %v293
    %v390 = vpack.c.bf16 %v374, %v374
    %v391 = vpack.c.bf16 %v375, %v375
    %v392 = vpack.c.bf16 %v376, %v376
    %v393 = vpack.c.bf16 %v377, %v377
    %v394 = vpack.c.bf16 %v378, %v378
    %v395 = vpack.c.bf16 %v379, %v379
    %v396 = vpack.c.bf16 %v380, %v380
    %v397 = vpack.c.bf16 %v381, %v381
    %v398 = vpack.c.bf16 %v382, %v382
    %v399 = vpack.c.bf16 %v383, %v383
    %v400 = vpack.c.bf16 %v384, %v384
    %v401 = vpack.c.bf16 %v385, %v385
    %v402 = vpack.c.bf16 %v386, %v386
    %v403 = vpack.c.bf16 %v387, %v387
    %v404 = vpack.c.bf16 %v388, %v388
    %v405 = vpack.c.bf16 %v389, %v389
    %406 = vst [vmem:[%s3] sm:$0xf] %v390
    %407 = vst [vmem:[%s3 + $0x4] sm:$0xf] %v391
    %408 = vst [vmem:[%s3 + $0x8] sm:$0xf] %v392
    %409 = vst [vmem:[%s3 + $0xc] sm:$0xf] %v393
    %410 = vst [vmem:[%s3 + $0x10] sm:$0xf] %v394
    %411 = vst [vmem:[%s3 + $0x14] sm:$0xf] %v395
    %412 = vst [vmem:[%s3 + $0x18] sm:$0xf] %v396
    %413 = vst [vmem:[%s3 + $0x1c] sm:$0xf] %v397
    %414 = vst [vmem:[%s3 + $0x20] sm:$0xf] %v398
    %415 = vst [vmem:[%s3 + $0x24] sm:$0xf] %v399
    %416 = vst [vmem:[%s3 + $0x28] sm:$0xf] %v400
    %417 = vst [vmem:[%s3 + $0x2c] sm:$0xf] %v401
    %418 = vst [vmem:[%s3 + $0x30] sm:$0xf] %v402
    %419 = vst [vmem:[%s3 + $0x34] sm:$0xf] %v403
    %420 = vst [vmem:[%s3 + $0x38] sm:$0xf] %v404
    %421 = vst [vmem:[%s3 + $0x3c] sm:$0xf] %v405
  $region21: #{edgepred_gprompt_forward.5} parent=0 // pred_fallthru
    _
  // Predicated region
  $region22: #{edgepred_gprompt_forward.5} parent=0 // pred_check
    _
  $region23: #{edgepred_gprompt_forward.5} parent=0 // pred_check_branch
    %423 = sbr.rel (0) target = $region25
  $region24: #{edgepred_gprompt_forward.5} parent=0 // pred_region
    _
  $region25: #{edgepred_gprompt_forward.5} parent=0 // pred_fallthru
    _
  // Predicated region
  $region26: #{edgepred_gprompt_forward.5} parent=0 // pred_check
    _
  $region27: #{edgepred_gprompt_forward.5} parent=0 // pred_check_branch
    %425 = sbr.rel (0) target = $region29
  $region28: #{edgepred_gprompt_forward.5} parent=0 // pred_region
    _
  $region29: #{edgepred_gprompt_forward.5} parent=0 // pred_fallthru
    _

// kernel: edgepred_gprompt_forward.4
$region0: #{edgepred_gprompt_forward.4}
  #allocation0 [shape = 'u32[]', space=smem, size = 0x4, offset = 0x4, fixed_abs, tag = 'smem constant byte address 0x4 - core index']
  #allocation1 [shape = 'u32[72,128]{1,0:T(1,128)}', space=vmem, size = 0x9000, scoped, tag = 'internal scratch']
  #allocation2 [shape = 'f32[128,128]{1,0:T(8,128)}', space=vmem, size = 0x10000, scoped, tag = 'scratch operand']
  %s0 = inlined_call_operand.vmem [shape: bf16[128,128], index: 0, kind: input, shape index: {}]
  %s1 = inlined_call_operand.vmem [shape: bf16[128,128], index: 1, kind: input, shape index: {}, may-alias: {1,2}]
  %s2 = inlined_call_operand.vmem [shape: bf16[128,128], index: 2, kind: input, shape index: {}, may-alias: {1,2}]
  %s3 = inlined_call_operand.vmem [shape: f32[128,1], index: 3, kind: input, shape index: {}]
  %s4 = inlined_call_operand.vmem [shape: f32[128,1], index: 4, kind: input, shape index: {}]
  %s5 = inlined_call_operand.vmem [shape: bf16[128,128], index: 5, kind: input, shape index: {}]
  %s6 = inlined_call_operand.vmem [shape: f32[1,128], index: 6, kind: input, shape index: {}]
  %s7 = inlined_call_operand.vmem [shape: bf16[128,128], index: 7, kind: input, shape index: {}]
  %s8 = inlined_call_operand.vmem [shape: f32[1,128], index: 8, kind: input, shape index: {}]
  %s9 = inlined_call_operand.vmem [shape: bf16[128,128], index: 9, kind: output, shape index: {}]
  %s10 = sld [smem:[#allocation0]]
  $region54: #{edgepred_gprompt_forward.4} parent=0
    _
  %s12 = ssub.s32 1, %s10
  %s13 = scalar_select 0, %s12, %s10
  // Predicated region
  $region2: #{edgepred_gprompt_forward.4} parent=0 // pred_check
    _
  $region3: #{edgepred_gprompt_forward.4} parent=0 // pred_check_branch
    %15 = sbr.rel (0) target = $region5
  $region4: #{edgepred_gprompt_forward.4} parent=0 // pred_region
    _
  $region5: #{edgepred_gprompt_forward.4} parent=0 // pred_fallthru
    _
  // Predicated region
  $region6: #{edgepred_gprompt_forward.4} parent=0 // pred_check
    _
  $region7: #{edgepred_gprompt_forward.4} parent=0 // pred_check_branch
    %17 = sbr.rel (0) target = $region9
  $region8: #{edgepred_gprompt_forward.4} parent=0 // pred_region
    _
  $region9: #{edgepred_gprompt_forward.4} parent=0 // pred_fallthru
    _
  // Predicated region
  $region10: #{edgepred_gprompt_forward.4} parent=0 // pred_check
    _
  $region11: #{edgepred_gprompt_forward.4} parent=0 // pred_check_branch
    %19 = sbr.rel (0) target = $region13
  $region12: #{edgepred_gprompt_forward.4} parent=0 // pred_region
    _
  $region13: #{edgepred_gprompt_forward.4} parent=0 // pred_fallthru
    _
  // Predicated region
  $region14: #{edgepred_gprompt_forward.4} parent=0 // pred_check
    _
  $region15: #{edgepred_gprompt_forward.4} parent=0 // pred_check_branch
    %21 = sbr.rel (0) target = $region17
  $region16: #{edgepred_gprompt_forward.4} parent=0 // pred_region
    _
  $region17: #{edgepred_gprompt_forward.4} parent=0 // pred_fallthru
    _
  // Predicated region
  $region18: #{edgepred_gprompt_forward.4} parent=0 // pred_check
    _
  $region19: #{edgepred_gprompt_forward.4} parent=0 // pred_check_branch
    %23 = sbr.rel (0) target = $region21
  $region20: #{edgepred_gprompt_forward.4} parent=0 // pred_region
    _
  $region21: #{edgepred_gprompt_forward.4} parent=0 // pred_fallthru
    _
  // Predicated region
  $region22: #{edgepred_gprompt_forward.4} parent=0 // pred_check
    _
  $region23: #{edgepred_gprompt_forward.4} parent=0 // pred_check_branch
    %25 = sbr.rel (0) target = $region25
  $region24: #{edgepred_gprompt_forward.4} parent=0 // pred_region
    _
  $region25: #{edgepred_gprompt_forward.4} parent=0 // pred_fallthru
    _
  // Predicated region
  $region26: #{edgepred_gprompt_forward.4} parent=0 // pred_check
    _
  $region27: #{edgepred_gprompt_forward.4} parent=0 // pred_check_branch
    %27 = sbr.rel (0) target = $region29
  $region28: #{edgepred_gprompt_forward.4} parent=0 // pred_region
    _
  $region29: #{edgepred_gprompt_forward.4} parent=0 // pred_fallthru
    _
  // Predicated region
  $region30: #{edgepred_gprompt_forward.4} parent=0 // pred_check
    _
  $region31: #{edgepred_gprompt_forward.4} parent=0 // pred_check_branch
    %29 = sbr.rel (0) target = $region33
  $region32: #{edgepred_gprompt_forward.4} parent=0 // pred_region
    _
  $region33: #{edgepred_gprompt_forward.4} parent=0 // pred_fallthru
    _
  // Predicated region
  $region34: #{edgepred_gprompt_forward.4} parent=0 // pred_check
    _
  $region35: #{edgepred_gprompt_forward.4} parent=0 // pred_check_branch
    %31 = sbr.rel (0) target = $region37
  $region36: #{edgepred_gprompt_forward.4} parent=0 // pred_region
    _
  $region37: #{edgepred_gprompt_forward.4} parent=0 // pred_fallthru
    _
  %p32 = scmp.eq.s32.totalorder 0, 0
  // Predicated region
  $region38: #{edgepred_gprompt_forward.4} parent=0 // pred_check
    %p33 = pneg %p32
  $region39: #{edgepred_gprompt_forward.4} parent=0 // pred_check_branch
    %35 = sbr.rel (%p33) target = $region41
  $region40: #{edgepred_gprompt_forward.4} parent=0 // pred_region
    %36 = vst [vmem:[#allocation2] sm:$0xff] 0.0
    %37 = vst [vmem:[#allocation2 + $0x8] sm:$0xff] 0.0
    %38 = vst [vmem:[#allocation2 + $0x10] sm:$0xff] 0.0
    %39 = vst [vmem:[#allocation2 + $0x18] sm:$0xff] 0.0
    %40 = vst [vmem:[#allocation2 + $0x20] sm:$0xff] 0.0
    %41 = vst [vmem:[#allocation2 + $0x28] sm:$0xff] 0.0
    %42 = vst [vmem:[#allocation2 + $0x30] sm:$0xff] 0.0
    %43 = vst [vmem:[#allocation2 + $0x38] sm:$0xff] 0.0
    %44 = vst [vmem:[#allocation2 + $0x40] sm:$0xff] 0.0
    %45 = vst [vmem:[#allocation2 + $0x48] sm:$0xff] 0.0
    %46 = vst [vmem:[#allocation2 + $0x50] sm:$0xff] 0.0
    %47 = vst [vmem:[#allocation2 + $0x58] sm:$0xff] 0.0
    %48 = vst [vmem:[#allocation2 + $0x60] sm:$0xff] 0.0
    %49 = vst [vmem:[#allocation2 + $0x68] sm:$0xff] 0.0
    %50 = vst [vmem:[#allocation2 + $0x70] sm:$0xff] 0.0
    %51 = vst [vmem:[#allocation2 + $0x78] sm:$0xff] 0.0
  $region41: #{edgepred_gprompt_forward.4} parent=0 // pred_fallthru
    _
  %v52 = vld [vmem:[#allocation2] sm:$0xff]
  %v53 = vld [vmem:[#allocation2 + $0x8] sm:$0xff]
  %v54 = vld [vmem:[#allocation2 + $0x10] sm:$0xff]
  %v55 = vld [vmem:[#allocation2 + $0x18] sm:$0xff]
  %v56 = vld [vmem:[#allocation2 + $0x20] sm:$0xff]
  %v57 = vld [vmem:[#allocation2 + $0x28] sm:$0xff]
  %v58 = vld [vmem:[#allocation2 + $0x30] sm:$0xff]
  %v59 = vld [vmem:[#allocation2 + $0x38] sm:$0xff]
  %v60 = vld [vmem:[#allocation2 + $0x40] sm:$0xff]
  %v61 = vld [vmem:[#allocation2 + $0x48] sm:$0xff]
  %v62 = vld [vmem:[#allocation2 + $0x50] sm:$0xff]
  %v63 = vld [vmem:[#allocation2 + $0x58] sm:$0xff]
  %v64 = vld [vmem:[#allocation2 + $0x60] sm:$0xff]
  %v65 = vld [vmem:[#allocation2 + $0x68] sm:$0xff]
  %v66 = vld [vmem:[#allocation2 + $0x70] sm:$0xff]
  %v67 = vld [vmem:[#allocation2 + $0x78] sm:$0xff]
  %v68 = vld [vmem:[%s0] sm:$0xf]
  %v69 = vld [vmem:[%s0 + $0x4] sm:$0xf]
  %v70 = vld [vmem:[%s0 + $0x8] sm:$0xf]
  %v71 = vld [vmem:[%s0 + $0xc] sm:$0xf]
  %v72 = vld [vmem:[%s0 + $0x10] sm:$0xf]
  %v73 = vld [vmem:[%s0 + $0x14] sm:$0xf]
  %v74 = vld [vmem:[%s0 + $0x18] sm:$0xf]
  %v75 = vld [vmem:[%s0 + $0x1c] sm:$0xf]
  %v76 = vld [vmem:[%s0 + $0x20] sm:$0xf]
  %v77 = vld [vmem:[%s0 + $0x24] sm:$0xf]
  %v78 = vld [vmem:[%s0 + $0x28] sm:$0xf]
  %v79 = vld [vmem:[%s0 + $0x2c] sm:$0xf]
  %v80 = vld [vmem:[%s0 + $0x30] sm:$0xf]
  %v81 = vld [vmem:[%s0 + $0x34] sm:$0xf]
  %v82 = vld [vmem:[%s0 + $0x38] sm:$0xf]
  %v83 = vld [vmem:[%s0 + $0x3c] sm:$0xf]
  %v84 = vld [vmem:[%s1] sm:$0xf]
  %v85 = vld [vmem:[%s1 + $0x4] sm:$0xf]
  %v86 = vld [vmem:[%s1 + $0x8] sm:$0xf]
  %v87 = vld [vmem:[%s1 + $0xc] sm:$0xf]
  %v88 = vld [vmem:[%s1 + $0x10] sm:$0xf]
  %v89 = vld [vmem:[%s1 + $0x14] sm:$0xf]
  %v90 = vld [vmem:[%s1 + $0x18] sm:$0xf]
  %v91 = vld [vmem:[%s1 + $0x1c] sm:$0xf]
  %v92 = vld [vmem:[%s1 + $0x20] sm:$0xf]
  %v93 = vld [vmem:[%s1 + $0x24] sm:$0xf]
  %v94 = vld [vmem:[%s1 + $0x28] sm:$0xf]
  %v95 = vld [vmem:[%s1 + $0x2c] sm:$0xf]
  %v96 = vld [vmem:[%s1 + $0x30] sm:$0xf]
  %v97 = vld [vmem:[%s1 + $0x34] sm:$0xf]
  %v98 = vld [vmem:[%s1 + $0x38] sm:$0xf]
  %v99 = vld [vmem:[%s1 + $0x3c] sm:$0xf]
  %v116 = vunpack.c.l.b16 %v68
  %v117 = vunpack.c.l.b16 %v69
  %v118 = vunpack.c.l.b16 %v70
  %v119 = vunpack.c.l.b16 %v71
  %v120 = vunpack.c.l.b16 %v72
  %v121 = vunpack.c.l.b16 %v73
  %v122 = vunpack.c.l.b16 %v74
  %v123 = vunpack.c.l.b16 %v75
  %v124 = vunpack.c.l.b16 %v76
  %v125 = vunpack.c.l.b16 %v77
  %v126 = vunpack.c.l.b16 %v78
  %v127 = vunpack.c.l.b16 %v79
  %v128 = vunpack.c.l.b16 %v80
  %v129 = vunpack.c.l.b16 %v81
  %v130 = vunpack.c.l.b16 %v82
  %v131 = vunpack.c.l.b16 %v83
  %v132 = vpack.c.b16 %v117, %v116
  %v133 = vpack.c.b16 %v119, %v118
  %v134 = vpack.c.b16 %v121, %v120
  %v135 = vpack.c.b16 %v123, %v122
  %v136 = vpack.c.b16 %v125, %v124
  %v137 = vpack.c.b16 %v127, %v126
  %v138 = vpack.c.b16 %v129, %v128
  %v139 = vpack.c.b16 %v131, %v130
  %v164 = vunpack.c.l.b16 %v84
  %v165 = vunpack.c.l.b16 %v85
  %v166 = vunpack.c.l.b16 %v86
  %v167 = vunpack.c.l.b16 %v87
  %v168 = vunpack.c.l.b16 %v88
  %v169 = vunpack.c.l.b16 %v89
  %v170 = vunpack.c.l.b16 %v90
  %v171 = vunpack.c.l.b16 %v91
  %v172 = vunpack.c.l.b16 %v92
  %v173 = vunpack.c.l.b16 %v93
  %v174 = vunpack.c.l.b16 %v94
  %v175 = vunpack.c.l.b16 %v95
  %v176 = vunpack.c.l.b16 %v96
  %v177 = vunpack.c.l.b16 %v97
  %v178 = vunpack.c.l.b16 %v98
  %v179 = vunpack.c.l.b16 %v99
  %v180 = vpack.c.b16 %v165, %v164
  %v181 = vpack.c.b16 %v167, %v166
  %v182 = vpack.c.b16 %v169, %v168
  %v183 = vpack.c.b16 %v171, %v170
  %v184 = vpack.c.b16 %v173, %v172
  %v185 = vpack.c.b16 %v175, %v174
  %v186 = vpack.c.b16 %v177, %v176
  %v187 = vpack.c.b16 %v179, %v178
  %196 = vmatpush.bf16.msra.mxu0 %v187
  %197 = vmatpush.bf16.msra.mxu0 %v186
  %198 = vmatpush.bf16.msra.mxu0 %v185
  %199 = vmatpush.bf16.msra.mxu0 %v184
  %200 = vmatpush.bf16.msra.mxu0 %v183
  %201 = vmatpush.bf16.msra.mxu0 %v182
  %202 = vmatpush.bf16.msra.mxu0 %v181
  %203 = vmatpush.bf16.msra.mxu0 %v180
  %204 = vmatmul.bf16.gmra.mxu0 %v132
  %v205 = vpop.f32.mrf.mxu0
  %v206 = vadd.f32 0.0, %v205
  %v207 = vpop.f32.mrf.mxu0
  %v208 = vadd.f32 0.0, %v207
  %209 = vmatmul.bf16.gmra.mxu0 %v133
  %v210 = vpop.f32.mrf.mxu0
  %v211 = vadd.f32 0.0, %v210
  %v212 = vpop.f32.mrf.mxu0
  %v213 = vadd.f32 0.0, %v212
  %214 = vmatmul.bf16.gmra.mxu0 %v134
  %v215 = vpop.f32.mrf.mxu0
  %v216 = vadd.f32 0.0, %v215
  %v217 = vpop.f32.mrf.mxu0
  %v218 = vadd.f32 0.0, %v217
  %219 = vmatmul.bf16.gmra.mxu0 %v135
  %v220 = vpop.f32.mrf.mxu0
  %v221 = vadd.f32 0.0, %v220
  %v222 = vpop.f32.mrf.mxu0
  %v223 = vadd.f32 0.0, %v222
  %224 = vmatmul.bf16.gmra.mxu0 %v136
  %v225 = vpop.f32.mrf.mxu0
  %v226 = vadd.f32 0.0, %v225
  %v227 = vpop.f32.mrf.mxu0
  %v228 = vadd.f32 0.0, %v227
  %229 = vmatmul.bf16.gmra.mxu0 %v137
  %v230 = vpop.f32.mrf.mxu0
  %v231 = vadd.f32 0.0, %v230
  %v232 = vpop.f32.mrf.mxu0
  %v233 = vadd.f32 0.0, %v232
  %234 = vmatmul.bf16.gmra.mxu0 %v138
  %v235 = vpop.f32.mrf.mxu0
  %v236 = vadd.f32 0.0, %v235
  %v237 = vpop.f32.mrf.mxu0
  %v238 = vadd.f32 0.0, %v237
  %239 = vmatmul.bf16.gmra.mxu0 %v139
  %v240 = vpop.f32.mrf.mxu0
  %v241 = vadd.f32 0.0, %v240
  %v242 = vpop.f32.mrf.mxu0
  %v243 = vadd.f32 0.0, %v242
  %244 = vdwg.mxu0
  %v245 = vadd.f32 %v52, %v206
  %v246 = vadd.f32 %v53, %v208
  %v247 = vadd.f32 %v54, %v211
  %v248 = vadd.f32 %v55, %v213
  %v249 = vadd.f32 %v56, %v216
  %v250 = vadd.f32 %v57, %v218
  %v251 = vadd.f32 %v58, %v221
  %v252 = vadd.f32 %v59, %v223
  %v253 = vadd.f32 %v60, %v226
  %v254 = vadd.f32 %v61, %v228
  %v255 = vadd.f32 %v62, %v231
  %v256 = vadd.f32 %v63, %v233
  %v257 = vadd.f32 %v64, %v236
  %v258 = vadd.f32 %v65, %v238
  %v259 = vadd.f32 %v66, %v241
  %v260 = vadd.f32 %v67, %v243
  %261 = vst [vmem:[#allocation2] sm:$0xff] %v245
  %262 = vst [vmem:[#allocation2 + $0x8] sm:$0xff] %v246
  %263 = vst [vmem:[#allocation2 + $0x10] sm:$0xff] %v247
  %264 = vst [vmem:[#allocation2 + $0x18] sm:$0xff] %v248
  %265 = vst [vmem:[#allocation2 + $0x20] sm:$0xff] %v249
  %266 = vst [vmem:[#allocation2 + $0x28] sm:$0xff] %v250
  %267 = vst [vmem:[#allocation2 + $0x30] sm:$0xff] %v251
  %268 = vst [vmem:[#allocation2 + $0x38] sm:$0xff] %v252
  %269 = vst [vmem:[#allocation2 + $0x40] sm:$0xff] %v253
  %270 = vst [vmem:[#allocation2 + $0x48] sm:$0xff] %v254
  %271 = vst [vmem:[#allocation2 + $0x50] sm:$0xff] %v255
  %272 = vst [vmem:[#allocation2 + $0x58] sm:$0xff] %v256
  %273 = vst [vmem:[#allocation2 + $0x60] sm:$0xff] %v257
  %274 = vst [vmem:[#allocation2 + $0x68] sm:$0xff] %v258
  %275 = vst [vmem:[#allocation2 + $0x70] sm:$0xff] %v259
  %276 = vst [vmem:[#allocation2 + $0x78] sm:$0xff] %v260
  // Predicated region
  $region42: #{edgepred_gprompt_forward.4} parent=0 // pred_check
    %p277 = pneg %p32
  $region43: #{edgepred_gprompt_forward.4} parent=0 // pred_check_branch
    %279 = sbr.rel (%p277) target = $region45
  $region44: #{edgepred_gprompt_forward.4} parent=0 // pred_region
    %v280 = vld [vmem:[%s3] sm:$0xff]
    %v281 = vld [vmem:[%s3 + $0x8] sm:$0xff]
    %v282 = vld [vmem:[%s3 + $0x10] sm:$0xff]
    %v283 = vld [vmem:[%s3 + $0x18] sm:$0xff]
    %v284 = vld [vmem:[%s3 + $0x20] sm:$0xff]
    %v285 = vld [vmem:[%s3 + $0x28] sm:$0xff]
    %v286 = vld [vmem:[%s3 + $0x30] sm:$0xff]
    %v287 = vld [vmem:[%s3 + $0x38] sm:$0xff]
    %v288 = vld [vmem:[%s3 + $0x40] sm:$0xff]
    %v289 = vld [vmem:[%s3 + $0x48] sm:$0xff]
    %v290 = vld [vmem:[%s3 + $0x50] sm:$0xff]
    %v291 = vld [vmem:[%s3 + $0x58] sm:$0xff]
    %v292 = vld [vmem:[%s3 + $0x60] sm:$0xff]
    %v293 = vld [vmem:[%s3 + $0x68] sm:$0xff]
    %v294 = vld [vmem:[%s3 + $0x70] sm:$0xff]
    %v295 = vld [vmem:[%s3 + $0x78] sm:$0xff]
    %v296 = vld [vmem:[#allocation2] sm:$0xff]
    %v297 = vld [vmem:[#allocation2 + $0x8] sm:$0xff]
    %v298 = vld [vmem:[#allocation2 + $0x10] sm:$0xff]
    %v299 = vld [vmem:[#allocation2 + $0x18] sm:$0xff]
    %v300 = vld [vmem:[#allocation2 + $0x20] sm:$0xff]
    %v301 = vld [vmem:[#allocation2 + $0x28] sm:$0xff]
    %v302 = vld [vmem:[#allocation2 + $0x30] sm:$0xff]
    %v303 = vld [vmem:[#allocation2 + $0x38] sm:$0xff]
    %v304 = vld [vmem:[#allocation2 + $0x40] sm:$0xff]
    %v305 = vld [vmem:[#allocation2 + $0x48] sm:$0xff]
    %v306 = vld [vmem:[#allocation2 + $0x50] sm:$0xff]
    %v307 = vld [vmem:[#allocation2 + $0x58] sm:$0xff]
    %v308 = vld [vmem:[#allocation2 + $0x60] sm:$0xff]
    %v309 = vld [vmem:[#allocation2 + $0x68] sm:$0xff]
    %v310 = vld [vmem:[#allocation2 + $0x70] sm:$0xff]
    %v311 = vld [vmem:[#allocation2 + $0x78] sm:$0xff]
    %v312 = vld [vmem:[%s2] sm:$0xf]
    %v313 = vld [vmem:[%s2 + $0x4] sm:$0xf]
    %v314 = vld [vmem:[%s2 + $0x8] sm:$0xf]
    %v315 = vld [vmem:[%s2 + $0xc] sm:$0xf]
    %v316 = vld [vmem:[%s2 + $0x10] sm:$0xf]
    %v317 = vld [vmem:[%s2 + $0x14] sm:$0xf]
    %v318 = vld [vmem:[%s2 + $0x18] sm:$0xf]
    %v319 = vld [vmem:[%s2 + $0x1c] sm:$0xf]
    %v320 = vld [vmem:[%s2 + $0x20] sm:$0xf]
    %v321 = vld [vmem:[%s2 + $0x24] sm:$0xf]
    %v322 = vld [vmem:[%s2 + $0x28] sm:$0xf]
    %v323 = vld [vmem:[%s2 + $0x2c] sm:$0xf]
    %v324 = vld [vmem:[%s2 + $0x30] sm:$0xf]
    %v325 = vld [vmem:[%s2 + $0x34] sm:$0xf]
    %v326 = vld [vmem:[%s2 + $0x38] sm:$0xf]
    %v327 = vld [vmem:[%s2 + $0x3c] sm:$0xf]
    %v328 = vunpack.c.l.bf16 %v312
    %v329 = vunpack.c.l.bf16 %v313
    %v330 = vunpack.c.l.bf16 %v314
    %v331 = vunpack.c.l.bf16 %v315
    %v332 = vunpack.c.l.bf16 %v316
    %v333 = vunpack.c.l.bf16 %v317
    %v334 = vunpack.c.l.bf16 %v318
    %v335 = vunpack.c.l.bf16 %v319
    %v336 = vunpack.c.l.bf16 %v320
    %v337 = vunpack.c.l.bf16 %v321
    %v338 = vunpack.c.l.bf16 %v322
    %v339 = vunpack.c.l.bf16 %v323
    %v340 = vunpack.c.l.bf16 %v324
    %v341 = vunpack.c.l.bf16 %v325
    %v342 = vunpack.c.l.bf16 %v326
    %v343 = vunpack.c.l.bf16 %v327
    %v344 = vadd.f32 %v296, %v328
    %v345 = vadd.f32 %v297, %v329
    %v346 = vadd.f32 %v298, %v330
    %v347 = vadd.f32 %v299, %v331
    %v348 = vadd.f32 %v300, %v332
    %v349 = vadd.f32 %v301, %v333
    %v350 = vadd.f32 %v302, %v334
    %v351 = vadd.f32 %v303, %v335
    %v352 = vadd.f32 %v304, %v336
    %v353 = vadd.f32 %v305, %v337
    %v354 = vadd.f32 %v306, %v338
    %v355 = vadd.f32 %v307, %v339
    %v356 = vadd.f32 %v308, %v340
    %v357 = vadd.f32 %v309, %v341
    %v358 = vadd.f32 %v310, %v342
    %v359 = vadd.f32 %v311, %v343
    %361 = vset.pattern.permute.xlu0 0
    %362 = vperm.xlu0 %361, %v280
    %v363 = vpop.permute.xlu0 %362
    %366 = vset.pattern.permute.xlu0 0
    %367 = vperm.xlu0 %366, %v281
    %v368 = vpop.permute.xlu0 %367
    %371 = vset.pattern.permute.xlu0 0
    %372 = vperm.xlu0 %371, %v282
    %v373 = vpop.permute.xlu0 %372
    %376 = vset.pattern.permute.xlu0 0
    %377 = vperm.xlu0 %376, %v283
    %v378 = vpop.permute.xlu0 %377
    %381 = vset.pattern.permute.xlu0 0
    %382 = vperm.xlu0 %381, %v284
    %v383 = vpop.permute.xlu0 %382
    %386 = vset.pattern.permute.xlu0 0
    %387 = vperm.xlu0 %386, %v285
    %v388 = vpop.permute.xlu0 %387
    %391 = vset.pattern.permute.xlu0 0
    %392 = vperm.xlu0 %391, %v286
    %v393 = vpop.permute.xlu0 %392
    %396 = vset.pattern.permute.xlu0 0
    %397 = vperm.xlu0 %396, %v287
    %v398 = vpop.permute.xlu0 %397
    %401 = vset.pattern.permute.xlu0 0
    %402 = vperm.xlu0 %401, %v288
    %v403 = vpop.permute.xlu0 %402
    %406 = vset.pattern.permute.xlu0 0
    %407 = vperm.xlu0 %406, %v289
    %v408 = vpop.permute.xlu0 %407
    %411 = vset.pattern.permute.xlu0 0
    %412 = vperm.xlu0 %411, %v290
    %v413 = vpop.permute.xlu0 %412
    %416 = vset.pattern.permute.xlu0 0
    %417 = vperm.xlu0 %416, %v291
    %v418 = vpop.permute.xlu0 %417
    %421 = vset.pattern.permute.xlu0 0
    %422 = vperm.xlu0 %421, %v292
    %v423 = vpop.permute.xlu0 %422
    %426 = vset.pattern.permute.xlu0 0
    %427 = vperm.xlu0 %426, %v293
    %v428 = vpop.permute.xlu0 %427
    %431 = vset.pattern.permute.xlu0 0
    %432 = vperm.xlu0 %431, %v294
    %v433 = vpop.permute.xlu0 %432
    %436 = vset.pattern.permute.xlu0 0
    %437 = vperm.xlu0 %436, %v295
    %v438 = vpop.permute.xlu0 %437
    %v440 = vmul.f32 %v363, %v344
    %v441 = vmul.f32 %v368, %v345
    %v442 = vmul.f32 %v373, %v346
    %v443 = vmul.f32 %v378, %v347
    %v444 = vmul.f32 %v383, %v348
    %v445 = vmul.f32 %v388, %v349
    %v446 = vmul.f32 %v393, %v350
    %v447 = vmul.f32 %v398, %v351
    %v448 = vmul.f32 %v403, %v352
    %v449 = vmul.f32 %v408, %v353
    %v450 = vmul.f32 %v413, %v354
    %v451 = vmul.f32 %v418, %v355
    %v452 = vmul.f32 %v423, %v356
    %v453 = vmul.f32 %v428, %v357
    %v454 = vmul.f32 %v433, %v358
    %v455 = vmul.f32 %v438, %v359
    %v456 = vpack.c.bf16 %v441, %v440
    %v457 = vpack.c.bf16 %v443, %v442
    %v458 = vpack.c.bf16 %v445, %v444
    %v459 = vpack.c.bf16 %v447, %v446
    %v460 = vpack.c.bf16 %v449, %v448
    %v461 = vpack.c.bf16 %v451, %v450
    %v462 = vpack.c.bf16 %v453, %v452
    %v463 = vpack.c.bf16 %v455, %v454
    %v464 = vld [vmem:[%s5] sm:$0xf]
    %v465 = vld [vmem:[%s5 + $0x4] sm:$0xf]
    %v466 = vld [vmem:[%s5 + $0x8] sm:$0xf]
    %v467 = vld [vmem:[%s5 + $0xc] sm:$0xf]
    %v468 = vld [vmem:[%s5 + $0x10] sm:$0xf]
    %v469 = vld [vmem:[%s5 + $0x14] sm:$0xf]
    %v470 = vld [vmem:[%s5 + $0x18] sm:$0xf]
    %v471 = vld [vmem:[%s5 + $0x1c] sm:$0xf]
    %v472 = vld [vmem:[%s5 + $0x20] sm:$0xf]
    %v473 = vld [vmem:[%s5 + $0x24] sm:$0xf]
    %v474 = vld [vmem:[%s5 + $0x28] sm:$0xf]
    %v475 = vld [vmem:[%s5 + $0x2c] sm:$0xf]
    %v476 = vld [vmem:[%s5 + $0x30] sm:$0xf]
    %v477 = vld [vmem:[%s5 + $0x34] sm:$0xf]
    %v478 = vld [vmem:[%s5 + $0x38] sm:$0xf]
    %v479 = vld [vmem:[%s5 + $0x3c] sm:$0xf]
    %v480 = vld [vmem:[%s6] sm:$0x1]
    %v482 = vperm.slane %v480, 0
    %v500 = vunpack.c.l.b16 %v464
    %v501 = vunpack.c.l.b16 %v465
    %v502 = vunpack.c.l.b16 %v466
    %v503 = vunpack.c.l.b16 %v467
    %v504 = vunpack.c.l.b16 %v468
    %v505 = vunpack.c.l.b16 %v469
    %v506 = vunpack.c.l.b16 %v470
    %v507 = vunpack.c.l.b16 %v471
    %v508 = vunpack.c.l.b16 %v472
    %v509 = vunpack.c.l.b16 %v473
    %v510 = vunpack.c.l.b16 %v474
    %v511 = vunpack.c.l.b16 %v475
    %v512 = vunpack.c.l.b16 %v476
    %v513 = vunpack.c.l.b16 %v477
    %v514 = vunpack.c.l.b16 %v478
    %v515 = vunpack.c.l.b16 %v479
    %v516 = vpack.c.b16 %v501, %v500
    %v517 = vpack.c.b16 %v503, %v502
    %v518 = vpack.c.b16 %v505, %v504
    %v519 = vpack.c.b16 %v507, %v506
    %v520 = vpack.c.b16 %v509, %v508
    %v521 = vpack.c.b16 %v511, %v510
    %v522 = vpack.c.b16 %v513, %v512
    %v523 = vpack.c.b16 %v515, %v514
    %532 = vmatpush.bf16.msra.mxu0 %v523
    %533 = vmatpush.bf16.msra.mxu0 %v522
    %534 = vmatpush.bf16.msra.mxu0 %v521
    %535 = vmatpush.bf16.msra.mxu0 %v520
    %536 = vmatpush.bf16.msra.mxu0 %v519
    %537 = vmatpush.bf16.msra.mxu0 %v518
    %538 = vmatpush.bf16.msra.mxu0 %v517
    %539 = vmatpush.bf16.msra.mxu0 %v516
    %540 = vmatmul.bf16.gmra.mxu0 %v456
    %v541 = vpop.f32.mrf.mxu0
    %v542 = vadd.f32 %v482, %v541
    %v543 = vpop.f32.mrf.mxu0
    %v544 = vadd.f32 %v482, %v543
    %545 = vmatmul.bf16.gmra.mxu0 %v457
    %v546 = vpop.f32.mrf.mxu0
    %v547 = vadd.f32 %v482, %v546
    %v548 = vpop.f32.mrf.mxu0
    %v549 = vadd.f32 %v482, %v548
    %550 = vmatmul.bf16.gmra.mxu0 %v458
    %v551 = vpop.f32.mrf.mxu0
    %v552 = vadd.f32 %v482, %v551
    %v553 = vpop.f32.mrf.mxu0
    %v554 = vadd.f32 %v482, %v553
    %555 = vmatmul.bf16.gmra.mxu0 %v459
    %v556 = vpop.f32.mrf.mxu0
    %v557 = vadd.f32 %v482, %v556
    %v558 = vpop.f32.mrf.mxu0
    %v559 = vadd.f32 %v482, %v558
    %560 = vmatmul.bf16.gmra.mxu0 %v460
    %v561 = vpop.f32.mrf.mxu0
    %v562 = vadd.f32 %v482, %v561
    %v563 = vpop.f32.mrf.mxu0
    %v564 = vadd.f32 %v482, %v563
    %565 = vmatmul.bf16.gmra.mxu0 %v461
    %v566 = vpop.f32.mrf.mxu0
    %v567 = vadd.f32 %v482, %v566
    %v568 = vpop.f32.mrf.mxu0
    %v569 = vadd.f32 %v482, %v568
    %570 = vmatmul.bf16.gmra.mxu0 %v462
    %v571 = vpop.f32.mrf.mxu0
    %v572 = vadd.f32 %v482, %v571
    %v573 = vpop.f32.mrf.mxu0
    %v574 = vadd.f32 %v482, %v573
    %575 = vmatmul.bf16.gmra.mxu0 %v463
    %v576 = vpop.f32.mrf.mxu0
    %v577 = vadd.f32 %v482, %v576
    %v578 = vpop.f32.mrf.mxu0
    %v579 = vadd.f32 %v482, %v578
    %580 = vdwg.mxu0
    %v581 = vmax.f32 %v542, 0.0
    %v582 = vmax.f32 %v544, 0.0
    %v583 = vmax.f32 %v547, 0.0
    %v584 = vmax.f32 %v549, 0.0
    %v585 = vmax.f32 %v552, 0.0
    %v586 = vmax.f32 %v554, 0.0
    %v587 = vmax.f32 %v557, 0.0
    %v588 = vmax.f32 %v559, 0.0
    %v589 = vmax.f32 %v562, 0.0
    %v590 = vmax.f32 %v564, 0.0
    %v591 = vmax.f32 %v567, 0.0
    %v592 = vmax.f32 %v569, 0.0
    %v593 = vmax.f32 %v572, 0.0
    %v594 = vmax.f32 %v574, 0.0
    %v595 = vmax.f32 %v577, 0.0
    %v596 = vmax.f32 %v579, 0.0
    %v597 = vpack.c.bf16 %v582, %v581
    %v598 = vpack.c.bf16 %v584, %v583
    %v599 = vpack.c.bf16 %v586, %v585
    %v600 = vpack.c.bf16 %v588, %v587
    %v601 = vpack.c.bf16 %v590, %v589
    %v602 = vpack.c.bf16 %v592, %v591
    %v603 = vpack.c.bf16 %v594, %v593
    %v604 = vpack.c.bf16 %v596, %v595
    %v605 = vld [vmem:[%s7] sm:$0xf]
    %v606 = vld [vmem:[%s7 + $0x4] sm:$0xf]
    %v607 = vld [vmem:[%s7 + $0x8] sm:$0xf]
    %v608 = vld [vmem:[%s7 + $0xc] sm:$0xf]
    %v609 = vld [vmem:[%s7 + $0x10] sm:$0xf]
    %v610 = vld [vmem:[%s7 + $0x14] sm:$0xf]
    %v611 = vld [vmem:[%s7 + $0x18] sm:$0xf]
    %v612 = vld [vmem:[%s7 + $0x1c] sm:$0xf]
    %v613 = vld [vmem:[%s7 + $0x20] sm:$0xf]
    %v614 = vld [vmem:[%s7 + $0x24] sm:$0xf]
    %v615 = vld [vmem:[%s7 + $0x28] sm:$0xf]
    %v616 = vld [vmem:[%s7 + $0x2c] sm:$0xf]
    %v617 = vld [vmem:[%s7 + $0x30] sm:$0xf]
    %v618 = vld [vmem:[%s7 + $0x34] sm:$0xf]
    %v619 = vld [vmem:[%s7 + $0x38] sm:$0xf]
    %v620 = vld [vmem:[%s7 + $0x3c] sm:$0xf]
    %v621 = vld [vmem:[%s8] sm:$0x1]
    %v623 = vperm.slane %v621, 0
    %v641 = vunpack.c.l.b16 %v605
    %v642 = vunpack.c.l.b16 %v606
    %v643 = vunpack.c.l.b16 %v607
    %v644 = vunpack.c.l.b16 %v608
    %v645 = vunpack.c.l.b16 %v609
    %v646 = vunpack.c.l.b16 %v610
    %v647 = vunpack.c.l.b16 %v611
    %v648 = vunpack.c.l.b16 %v612
    %v649 = vunpack.c.l.b16 %v613
    %v650 = vunpack.c.l.b16 %v614
    %v651 = vunpack.c.l.b16 %v615
    %v652 = vunpack.c.l.b16 %v616
    %v653 = vunpack.c.l.b16 %v617
    %v654 = vunpack.c.l.b16 %v618
    %v655 = vunpack.c.l.b16 %v619
    %v656 = vunpack.c.l.b16 %v620
    %v657 = vpack.c.b16 %v642, %v641
    %v658 = vpack.c.b16 %v644, %v643
    %v659 = vpack.c.b16 %v646, %v645
    %v660 = vpack.c.b16 %v648, %v647
    %v661 = vpack.c.b16 %v650, %v649
    %v662 = vpack.c.b16 %v652, %v651
    %v663 = vpack.c.b16 %v654, %v653
    %v664 = vpack.c.b16 %v656, %v655
    %673 = vmatpush.bf16.msra.mxu0 %v664
    %674 = vmatpush.bf16.msra.mxu0 %v663
    %675 = vmatpush.bf16.msra.mxu0 %v662
    %676 = vmatpush.bf16.msra.mxu0 %v661
    %677 = vmatpush.bf16.msra.mxu0 %v660
    %678 = vmatpush.bf16.msra.mxu0 %v659
    %679 = vmatpush.bf16.msra.mxu0 %v658
    %680 = vmatpush.bf16.msra.mxu0 %v657
    %681 = vmatmul.bf16.gmra.mxu0 %v597
    %v682 = vpop.f32.mrf.mxu0
    %v683 = vadd.f32 %v623, %v682
    %v684 = vpop.f32.mrf.mxu0
    %v685 = vadd.f32 %v623, %v684
    %686 = vmatmul.bf16.gmra.mxu0 %v598
    %v687 = vpop.f32.mrf.mxu0
    %v688 = vadd.f32 %v623, %v687
    %v689 = vpop.f32.mrf.mxu0
    %v690 = vadd.f32 %v623, %v689
    %691 = vmatmul.bf16.gmra.mxu0 %v599
    %v692 = vpop.f32.mrf.mxu0
    %v693 = vadd.f32 %v623, %v692
    %v694 = vpop.f32.mrf.mxu0
    %v695 = vadd.f32 %v623, %v694
    %696 = vmatmul.bf16.gmra.mxu0 %v600
    %v697 = vpop.f32.mrf.mxu0
    %v698 = vadd.f32 %v623, %v697
    %v699 = vpop.f32.mrf.mxu0
    %v700 = vadd.f32 %v623, %v699
    %701 = vmatmul.bf16.gmra.mxu0 %v601
    %v702 = vpop.f32.mrf.mxu0
    %v703 = vadd.f32 %v623, %v702
    %v704 = vpop.f32.mrf.mxu0
    %v705 = vadd.f32 %v623, %v704
    %706 = vmatmul.bf16.gmra.mxu0 %v602
    %v707 = vpop.f32.mrf.mxu0
    %v708 = vadd.f32 %v623, %v707
    %v709 = vpop.f32.mrf.mxu0
    %v710 = vadd.f32 %v623, %v709
    %711 = vmatmul.bf16.gmra.mxu0 %v603
    %v712 = vpop.f32.mrf.mxu0
    %v713 = vadd.f32 %v623, %v712
    %v714 = vpop.f32.mrf.mxu0
    %v715 = vadd.f32 %v623, %v714
    %716 = vmatmul.bf16.gmra.mxu0 %v604
    %v717 = vpop.f32.mrf.mxu0
    %v718 = vadd.f32 %v623, %v717
    %v719 = vpop.f32.mrf.mxu0
    %v720 = vadd.f32 %v623, %v719
    %721 = vdwg.mxu0
    %v722 = vld [vmem:[%s4] sm:$0xff]
    %v723 = vld [vmem:[%s4 + $0x8] sm:$0xff]
    %v724 = vld [vmem:[%s4 + $0x10] sm:$0xff]
    %v725 = vld [vmem:[%s4 + $0x18] sm:$0xff]
    %v726 = vld [vmem:[%s4 + $0x20] sm:$0xff]
    %v727 = vld [vmem:[%s4 + $0x28] sm:$0xff]
    %v728 = vld [vmem:[%s4 + $0x30] sm:$0xff]
    %v729 = vld [vmem:[%s4 + $0x38] sm:$0xff]
    %v730 = vld [vmem:[%s4 + $0x40] sm:$0xff]
    %v731 = vld [vmem:[%s4 + $0x48] sm:$0xff]
    %v732 = vld [vmem:[%s4 + $0x50] sm:$0xff]
    %v733 = vld [vmem:[%s4 + $0x58] sm:$0xff]
    %v734 = vld [vmem:[%s4 + $0x60] sm:$0xff]
    %v735 = vld [vmem:[%s4 + $0x68] sm:$0xff]
    %v736 = vld [vmem:[%s4 + $0x70] sm:$0xff]
    %v737 = vld [vmem:[%s4 + $0x78] sm:$0xff]
    %739 = vset.pattern.permute.xlu0 0
    %740 = vperm.xlu0 %739, %v722
    %v741 = vpop.permute.xlu0 %740
    %744 = vset.pattern.permute.xlu0 0
    %745 = vperm.xlu0 %744, %v723
    %v746 = vpop.permute.xlu0 %745
    %749 = vset.pattern.permute.xlu0 0
    %750 = vperm.xlu0 %749, %v724
    %v751 = vpop.permute.xlu0 %750
    %754 = vset.pattern.permute.xlu0 0
    %755 = vperm.xlu0 %754, %v725
    %v756 = vpop.permute.xlu0 %755
    %759 = vset.pattern.permute.xlu0 0
    %760 = vperm.xlu0 %759, %v726
    %v761 = vpop.permute.xlu0 %760
    %764 = vset.pattern.permute.xlu0 0
    %765 = vperm.xlu0 %764, %v727
    %v766 = vpop.permute.xlu0 %765
    %769 = vset.pattern.permute.xlu0 0
    %770 = vperm.xlu0 %769, %v728
    %v771 = vpop.permute.xlu0 %770
    %774 = vset.pattern.permute.xlu0 0
    %775 = vperm.xlu0 %774, %v729
    %v776 = vpop.permute.xlu0 %775
    %779 = vset.pattern.permute.xlu0 0
    %780 = vperm.xlu0 %779, %v730
    %v781 = vpop.permute.xlu0 %780
    %784 = vset.pattern.permute.xlu0 0
    %785 = vperm.xlu0 %784, %v731
    %v786 = vpop.permute.xlu0 %785
    %789 = vset.pattern.permute.xlu0 0
    %790 = vperm.xlu0 %789, %v732
    %v791 = vpop.permute.xlu0 %790
    %794 = vset.pattern.permute.xlu0 0
    %795 = vperm.xlu0 %794, %v733
    %v796 = vpop.permute.xlu0 %795
    %799 = vset.pattern.permute.xlu0 0
    %800 = vperm.xlu0 %799, %v734
    %v801 = vpop.permute.xlu0 %800
    %804 = vset.pattern.permute.xlu0 0
    %805 = vperm.xlu0 %804, %v735
    %v806 = vpop.permute.xlu0 %805
    %809 = vset.pattern.permute.xlu0 0
    %810 = vperm.xlu0 %809, %v736
    %v811 = vpop.permute.xlu0 %810
    %814 = vset.pattern.permute.xlu0 0
    %815 = vperm.xlu0 %814, %v737
    %v816 = vpop.permute.xlu0 %815
    %v818 = vmul.f32 %v741, %v683
    %v819 = vmul.f32 %v746, %v685
    %v820 = vmul.f32 %v751, %v688
    %v821 = vmul.f32 %v756, %v690
    %v822 = vmul.f32 %v761, %v693
    %v823 = vmul.f32 %v766, %v695
    %v824 = vmul.f32 %v771, %v698
    %v825 = vmul.f32 %v776, %v700
    %v826 = vmul.f32 %v781, %v703
    %v827 = vmul.f32 %v786, %v705
    %v828 = vmul.f32 %v791, %v708
    %v829 = vmul.f32 %v796, %v710
    %v830 = vmul.f32 %v801, %v713
    %v831 = vmul.f32 %v806, %v715
    %v832 = vmul.f32 %v811, %v718
    %v833 = vmul.f32 %v816, %v720
    %v834 = vpack.c.bf16 %v818, %v818
    %v835 = vpack.c.bf16 %v819, %v819
    %v836 = vpack.c.bf16 %v820, %v820
    %v837 = vpack.c.bf16 %v821, %v821
    %v838 = vpack.c.bf16 %v822, %v822
    %v839 = vpack.c.bf16 %v823, %v823
    %v840 = vpack.c.bf16 %v824, %v824
    %v841 = vpack.c.bf16 %v825, %v825
    %v842 = vpack.c.bf16 %v826, %v826
    %v843 = vpack.c.bf16 %v827, %v827
    %v844 = vpack.c.bf16 %v828, %v828
    %v845 = vpack.c.bf16 %v829, %v829
    %v846 = vpack.c.bf16 %v830, %v830
    %v847 = vpack.c.bf16 %v831, %v831
    %v848 = vpack.c.bf16 %v832, %v832
    %v849 = vpack.c.bf16 %v833, %v833
    %850 = vst [vmem:[%s9] sm:$0xf] %v834
    %851 = vst [vmem:[%s9 + $0x4] sm:$0xf] %v835
    %852 = vst [vmem:[%s9 + $0x8] sm:$0xf] %v836
    %853 = vst [vmem:[%s9 + $0xc] sm:$0xf] %v837
    %854 = vst [vmem:[%s9 + $0x10] sm:$0xf] %v838
    %855 = vst [vmem:[%s9 + $0x14] sm:$0xf] %v839
    %856 = vst [vmem:[%s9 + $0x18] sm:$0xf] %v840
    %857 = vst [vmem:[%s9 + $0x1c] sm:$0xf] %v841
    %858 = vst [vmem:[%s9 + $0x20] sm:$0xf] %v842
    %859 = vst [vmem:[%s9 + $0x24] sm:$0xf] %v843
    %860 = vst [vmem:[%s9 + $0x28] sm:$0xf] %v844
    %861 = vst [vmem:[%s9 + $0x2c] sm:$0xf] %v845
    %862 = vst [vmem:[%s9 + $0x30] sm:$0xf] %v846
    %863 = vst [vmem:[%s9 + $0x34] sm:$0xf] %v847
    %864 = vst [vmem:[%s9 + $0x38] sm:$0xf] %v848
    %865 = vst [vmem:[%s9 + $0x3c] sm:$0xf] %v849
  $region45: #{edgepred_gprompt_forward.4} parent=0 // pred_fallthru
    _
  // Predicated region
  $region46: #{edgepred_gprompt_forward.4} parent=0 // pred_check
    _
  $region47: #{edgepred_gprompt_forward.4} parent=0 // pred_check_branch
    %867 = sbr.rel (0) target = $region49
  $region48: #{edgepred_gprompt_forward.4} parent=0 // pred_region
    _
  $region49: #{edgepred_gprompt_forward.4} parent=0 // pred_fallthru
    _
  // Predicated region
  $region50: #{edgepred_gprompt_forward.4} parent=0 // pred_check
    _
  $region51: #{edgepred_gprompt_forward.4} parent=0 // pred_check_branch
    %869 = sbr.rel (0) target = $region53
  $region52: #{edgepred_gprompt_forward.4} parent=0 // pred_region
    _
  $region53: #{edgepred_gprompt_forward.4} parent=0 // pred_fallthru
    _

</llo_original>
